<compile_context>
chip_gen: v6e
topology: v6e:2x2x1
jax: 0.10.0
libtpu: 0.0.40
codegen_flags: <defaults>
</compile_context>

<pallas_src>
import functools

import jax
import jax.numpy as jnp
from jax.experimental import pallas as pl
from jax.experimental.pallas import tpu as pltpu


# -----------------------------------------------------------------------------
# Helpers
# -----------------------------------------------------------------------------
def _round_up(x, m):
    return ((x + m - 1) // m) * m


def _pick_tiles(n_pad):
    """Row tile tm and reduction tile tk for an n_pad (multiple of 512) grid."""
    # tm: keep >= 2 row blocks so the 'parallel' axis can shard across both
    # TensorCores on v7x; 512 reaches ~85% of HBM roofline (measured on v6e).
    tm = 512 if n_pad >= 1024 else n_pad // 2
    # tk: bigger reduction tile => fewer grid steps, larger contiguous DMAs.
    tk = 1024 if n_pad % 1024 == 0 else 512
    return tm, min(tk, n_pad)


# -----------------------------------------------------------------------------
# Pallas kernel:  relu( d_row * ((A+I)_int8 @ XW_colscaled) + b )
# -----------------------------------------------------------------------------
def _propagate_kernel(a_ref, xw_ref, dscale_ref, b_ref, o_ref, acc_ref,
                      *, tk, xw_resident):
    k = pl.program_id(1)

    @pl.when(k == 0)
    def _():
        acc_ref[...] = jnp.zeros_like(acc_ref)

    # int8 adjacency counts streamed from HBM (1 B/elem); cast to bf16 on the
    # VPU (free slot — kernel is HBM-bound) and accumulate in f32 on the MXU.
    a_blk = a_ref[...].astype(jnp.bfloat16)
    if xw_resident:
        # XW is VMEM-resident (constant block index => fetched once); slice the
        # k-th reduction chunk in-kernel.
        off = pl.multiple_of(k * tk, tk)
        xw_blk = xw_ref[pl.ds(off, tk), :]
    else:
        xw_blk = xw_ref[...]
    acc_ref[...] += jnp.dot(a_blk, xw_blk, preferred_element_type=jnp.float32)

    @pl.when(k == pl.num_programs(1) - 1)
    def _():
        # Row-side D^{-1/2} (exact, f32), bias, ReLU.
        o_ref[...] = jnp.maximum(
            acc_ref[...] * dscale_ref[...] + b_ref[...], 0.0
        ).astype(o_ref.dtype)


def gcn_propagate(a_counts, d_inv_sqrt, xw, bias):
    """relu(A_hat @ XW + bias) with A_hat = D^{-1/2}(A+I)D^{-1/2}.

    a_counts:   [n_pad, n_pad] int8 exact (A+I) counts (zero padded).
    d_inv_sqrt: [n_pad, 1] f32 degree^{-1/2} (zero padded).
    xw:         [n, c] f32 (X @ W).
    bias:       [1, c] f32.
    Returns [n, c] f32.
    """
    n, c = xw.shape
    n_pad = a_counts.shape[0]
    d = d_inv_sqrt[:n]                          # [n, 1]
    xw_s = d * xw                               # column-side D^{-1/2}

    # Small-graph fallback: launch/DMA overhead + padding dominate; XLA wins.
    if n <= 256:
        y = a_counts[:n, :n].astype(jnp.float32) @ xw_s
        return jnp.maximum(d * y + bias, 0.0)

    c_pad = _round_up(c, 128)
    tm, tk = _pick_tiles(n_pad)
    grid = (n_pad // tm, n_pad // tk)

    # XW kept resident in VMEM unless too large (double-buffered copy budget).
    xw_bytes = n_pad * c_pad * 2
    xw_resident = 2 * xw_bytes <= 24 * 1024 * 1024

    xw_p = jnp.zeros((n_pad, c_pad), jnp.bfloat16).at[:n, :c].set(
        xw_s.astype(jnp.bfloat16)
    )
    b_p = jnp.zeros((1, c_pad), jnp.float32).at[:, :c].set(bias.astype(jnp.float32))

    if xw_resident:
        xw_spec = pl.BlockSpec((n_pad, c_pad), lambda i, k: (0, 0))   # loaded once
        xw_fetch_bytes = xw_bytes
    else:
        xw_spec = pl.BlockSpec((tk, c_pad), lambda i, k: (k, 0))      # streamed
        xw_fetch_bytes = xw_bytes * grid[0]

    cost = pl.CostEstimate(
        flops=int(2 * n_pad * n_pad * c_pad),
        transcendentals=0,
        bytes_accessed=int(n_pad * n_pad * 1 + xw_fetch_bytes
                           + n_pad * c_pad * 4 + n_pad * 4 + c_pad * 4),
    )

    out = pl.pallas_call(
        functools.partial(_propagate_kernel, tk=tk, xw_resident=xw_resident),
        grid=grid,
        in_specs=[
            pl.BlockSpec((tm, tk), lambda i, k: (i, k)),      # int8 A tiles (streamed)
            xw_spec,                                          # XW (resident or streamed)
            pl.BlockSpec((tm, 1), lambda i, k: (i, 0)),       # row-side D^{-1/2}
            pl.BlockSpec((1, c_pad), lambda i, k: (0, 0)),    # bias
        ],
        out_specs=pl.BlockSpec((tm, c_pad), lambda i, k: (i, 0)),
        out_shape=jax.ShapeDtypeStruct((n_pad, c_pad), jnp.float32),
        scratch_shapes=[pltpu.VMEM((tm, c_pad), jnp.float32)],
        compiler_params=pltpu.CompilerParams(
            dimension_semantics=("parallel", "arbitrary"),
            vmem_limit_bytes=48 * 1024 * 1024,   # 64 MiB-physical safe on v7x
        ),
        cost_estimate=cost,
    )(a_counts, xw_p, d_inv_sqrt, b_p)
    return out[:n, :c]


# -----------------------------------------------------------------------------
# Graph preprocessing (done ONCE per graph, outside the jitted forward)
# -----------------------------------------------------------------------------
def prepare_graph(edge_index, num_nodes):
    """Exact (A+I) counts as padded int8 + f32 degree^{-1/2} factors.

    PyG GCNConv convention: messages flow edge_index[0] (src) -> [1] (dst);
    duplicate edges accumulate (scatter-add). A_hat = D^{-1/2}(A+I)D^{-1/2}.
    """
    src, dst = edge_index[0], edge_index[1]
    a = jnp.zeros((num_nodes, num_nodes), jnp.int32).at[dst, src].add(1)
    a_tilde = a + jnp.eye(num_nodes, dtype=jnp.int32)
    deg = jnp.sum(a_tilde, axis=1).astype(jnp.float32)
    d_inv_sqrt = jnp.where(deg > 0, 1.0 / jnp.sqrt(jnp.where(deg > 0, deg, 1.0)), 0.0)

    n_pad = _round_up(max(num_nodes, 1), 512)   # never lets tiles collapse to 128
    # TODO(synk): edge multiplicities > 127 would need int16/bf16 counts.
    a_pad = jnp.zeros((n_pad, n_pad), jnp.int8).at[:num_nodes, :num_nodes].set(
        jnp.clip(a_tilde, 0, 127).astype(jnp.int8)
    )
    d_pad = jnp.zeros((n_pad, 1), jnp.float32).at[:num_nodes, 0].set(d_inv_sqrt)
    return {"a_counts": a_pad, "d_inv_sqrt": d_pad}


def build_mean_pool_matrix(batch, num_graphs, num_nodes):
    """P[g, n] = 1/|graph g| if batch[n] == g else 0  -> global_mean_pool."""
    one_hot = (batch[None, :] == jnp.arange(num_graphs)[:, None]).astype(jnp.float32)
    counts = jnp.maximum(jnp.sum(one_hot, axis=1, keepdims=True), 1.0)
    return one_hot / counts


def init_params(key, num_features, hidden_channels, num_classes, hidden_layer):
    params = {}
    k = key

    def dense(k, fan_in, fan_out):
        k, sub = jax.random.split(k)
        w = jax.random.normal(sub, (fan_in, fan_out), jnp.float32) * (
            1.0 / jnp.sqrt(jnp.float32(fan_in))
        )
        b = jnp.zeros((1, fan_out), jnp.float32)
        return k, w, b

    k, params["w_h1"], params["b_h1"] = dense(k, num_features, hidden_channels)
    k, params["w_h2"], params["b_h2"] = dense(k, num_features, hidden_channels)
    seq_w, seq_b = [], []
    for _ in range(hidden_layer * 2):
        k, w, b = dense(k, hidden_channels, hidden_channels)
        seq_w.append(w)
        seq_b.append(b)
    params["seq_w"] = seq_w
    params["seq_b"] = seq_b
    k, params["w_lin"], params["b_lin"] = dense(k, hidden_channels, num_classes)
    return params


# -----------------------------------------------------------------------------
# Forward pass (matches CrossBlockGnn.forward in eval mode)
# -----------------------------------------------------------------------------
def cross_block_gnn_forward(params, x, graph, pool_mat, graph_hidden=None):
    hidden = params["w_h1"].shape[1]
    a_counts, d_inv_sqrt = graph["a_counts"], graph["d_inv_sqrt"]

    # ---- input projections: both streams fused into one adjacency pass ------
    xw = jnp.concatenate([x @ params["w_h1"], x @ params["w_h2"]], axis=1)
    b = jnp.concatenate([params["b_h1"], params["b_h2"]], axis=1)
    h = gcn_propagate(a_counts, d_inv_sqrt, xw, b)
    x_cur_1, x_cur_2 = h[:, :hidden], h[:, hidden:]

    n = x.shape[0]
    x_pre_1 = jnp.zeros((n, hidden), jnp.float32)
    x_pre_2 = jnp.zeros((n, hidden), jnp.float32)

    # ---- cross-residual hidden blocks (two streams per pair, fused) ---------
    num_pairs = len(params["seq_w"]) // 2
    for l in range(num_pairs):
        x_temp_1, x_temp_2 = x_cur_1, x_cur_2
        in1 = x_cur_1 + x_pre_2         # F.dropout(training=False) == identity
        in2 = x_cur_2 + x_pre_1
        xw = jnp.concatenate(
            [in1 @ params["seq_w"][2 * l], in2 @ params["seq_w"][2 * l + 1]], axis=1
        )
        b = jnp.concatenate(
            [params["seq_b"][2 * l], params["seq_b"][2 * l + 1]], axis=1
        )
        h = gcn_propagate(a_counts, d_inv_sqrt, xw, b)
        x_cur_1, x_cur_2 = h[:, :hidden], h[:, hidden:]
        x_pre_1, x_pre_2 = x_temp_1, x_temp_2

    x_cur = x_cur_1 + x_cur_2

    # ---- global mean pool + linear head (tiny: plain XLA) -------------------
    global_mean = pool_mat @ x_cur
    if graph_hidden is not None:
        global_mean = global_mean + graph_hidden
    y = global_mean @ params["w_lin"] + params["b_lin"]
    return y, global_mean


# Pure-JAX reference (dense f32 A_hat) for a correctness sanity check.
def _reference_forward(params, x, a_hat, pool_mat, graph_hidden=None):
    def layer(xin, w, b):
        return jnp.maximum(a_hat @ (xin @ w) + b, 0.0)

    x1 = layer(x, params["w_h1"], params["b_h1"])
    x2 = layer(x, params["w_h2"], params["b_h2"])
    p1 = jnp.zeros_like(x1)
    p2 = jnp.zeros_like(x2)
    for l in range(len(params["seq_w"]) // 2):
        t1, t2 = x1, x2
        x1 = layer(x1 + p2, params["seq_w"][2 * l], params["seq_b"][2 * l])
        x2 = layer(x2 + p1, params["seq_w"][2 * l + 1], params["seq_b"][2 * l + 1])
        p1, p2 = t1, t2
    xc = x1 + x2
    gm = pool_mat @ xc
    if graph_hidden is not None:
        gm = gm + graph_hidden
    y = gm @ params["w_lin"] + params["b_lin"]
    return y, gm


# -----------------------------------------------------------------------------
# Example
# -----------------------------------------------------------------------------
if __name__ == "__main__":
    NUM_GRAPHS = 2
    NODES_PER_GRAPH = 256                     # N=512 so the Pallas path (not the
    N = NUM_GRAPHS * NODES_PER_GRAPH          # small-graph XLA fallback) runs
    NUM_FEATURES = 8                          # dataset.num_node_features
    HIDDEN = 32                               # hidden_channels
    NUM_CLASSES = 4                           # dataset.num_classes
    HIDDEN_LAYER = 2                          # -> 4 sequence blocks, 2 loop steps

    key = jax.random.PRNGKey(0)
    key, k_x = jax.random.split(key)

    # Node features [N, F]
    x = jax.random.normal(k_x, (N, NUM_FEATURES), jnp.float32)

    # Edge index [2, E]: an undirected ring within each graph (both directions).
    srcs, dsts = [], []
    for g in range(NUM_GRAPHS):
        off = g * NODES_PER_GRAPH
        for i in range(NODES_PER_GRAPH):
            a, b = off + i, off + (i + 1) % NODES_PER_GRAPH
            srcs += [a, b]
            dsts += [b, a]
    edge_index = jnp.array([srcs, dsts], dtype=jnp.int32)   # [2, 2*N]

    # batch vector [N]
    batch = jnp.repeat(jnp.arange(NUM_GRAPHS, dtype=jnp.int32), NODES_PER_GRAPH)

    # Adjacency prep hoisted out of the per-forward path (once per graph).
    graph = prepare_graph(edge_index, N)
    pool_mat = build_mean_pool_matrix(batch, NUM_GRAPHS, N)
    params = init_params(key, NUM_FEATURES, HIDDEN, NUM_CLASSES, HIDDEN_LAYER)

    fwd = jax.jit(cross_block_gnn_forward)
    y, global_mean = fwd(params, x, graph, pool_mat)
    jax.block_until_ready((y, global_mean))

    assert y.shape == (NUM_GRAPHS, NUM_CLASSES)
    assert global_mean.shape == (NUM_GRAPHS, HIDDEN)
    assert bool(jnp.all(jnp.isfinite(y))) and bool(jnp.all(jnp.isfinite(global_mean)))

    # Sanity check against a dense f32 XLA reference (XW in bf16 -> loose tol).
    d = graph["d_inv_sqrt"][:N]                                   # [N, 1]
    a_hat_ref = d * graph["a_counts"][:N, :N].astype(jnp.float32) * d.T
    y_ref, gm_ref = _reference_forward(params, x, a_hat_ref, pool_mat)
    err_y = float(jnp.max(jnp.abs(y - y_ref)) / (jnp.max(jnp.abs(y_ref)) + 1e-6))
    err_g = float(
        jnp.max(jnp.abs(global_mean - gm_ref)) / (jnp.max(jnp.abs(gm_ref)) + 1e-6)
    )
    assert err_y < 5e-2 and err_g < 5e-2, (err_y, err_g)

    print("KERNEL_OK")
</pallas_src>

<mosaic_0001>
module attributes {stable_mosaic.version = 11 : i64} {
  func.func @_propagate_kernel(%arg0: i32, %arg1: i32, %arg2: memref<256x512xi8, #tpu.memory_space<vmem>>, %arg3: memref<512x128xbf16, #tpu.memory_space<vmem>>, %arg4: memref<256x1xf32, #tpu.memory_space<vmem>>, %arg5: memref<1x128xf32, #tpu.memory_space<vmem>>, %arg6: memref<256x128xf32, #tpu.memory_space<vmem>>, %arg7: memref<256x128xf32, #tpu.memory_space<vmem>>) attributes {dimension_semantics = [#tpu.dimension_semantics<parallel>, #tpu.dimension_semantics<arbitrary>], iteration_bounds = array<i64: 2, 1>, scalar_prefetch = 0 : i64, scratch_operands = 1 : i64, tpu.core_type = #tpu.core_type<tc>, window_params = [{transform_indices = @transform_0, window_bounds = array<i64: 256, 512>}, {pipeline_mode = #tpu.pipeline_mode<synchronous>, transform_indices = @transform_1, window_bounds = array<i64: 512, 128>}, {transform_indices = @transform_2, window_bounds = array<i64: 256, 1>}, {pipeline_mode = #tpu.pipeline_mode<synchronous>, transform_indices = @transform_3, window_bounds = array<i64: 1, 128>}, {transform_indices = @transform_4, window_bounds = array<i64: 256, 128>}]} {
    %c0_i32 = arith.constant 0 : i32
    %0 = arith.cmpi eq, %arg1, %c0_i32 : i32
    %1 = arith.extui %0 : i1 to i32
    %c0_i32_0 = arith.constant 0 : i32
    %2 = arith.cmpi ne, %1, %c0_i32_0 : i32
    scf.if %2 {
      %cst_9 = arith.constant 0.000000e+00 : f32
      %16 = vector.broadcast %cst_9 : f32 to vector<256x128xf32>
      %c0_10 = arith.constant 0 : index
      %c0_11 = arith.constant 0 : index
      %17 = vector.load %arg7[%c0_10, %c0_11] : memref<256x128xf32, #tpu.memory_space<vmem>>, vector<256x128xf32>
      tpu.vector_store %arg7[%c0_10, %c0_11], %16 {strides = array<i32>} : memref<256x128xf32, #tpu.memory_space<vmem>>, vector<256x128xf32>,
    } else {
    }
    %c0 = arith.constant 0 : index
    %c0_1 = arith.constant 0 : index
    %3 = vector.load %arg2[%c0, %c0_1] : memref<256x512xi8, #tpu.memory_space<vmem>>, vector<256x512xi8>
    %4 = arith.sitofp %3 : vector<256x512xi8> to vector<256x512xbf16>
    %c512_i32 = arith.constant 512 : i32
    %5 = arith.muli %arg1, %c512_i32 : i32
    %6 = tpu.assume_multiple %5, 512 : i32
    %7 = arith.index_cast %6 : i32 to index
    %c0_2 = arith.constant 0 : index
    %8 = vector.load %arg3[%7, %c0_2] : memref<512x128xbf16, #tpu.memory_space<vmem>>, vector<512x128xbf16>
    %c0_3 = arith.constant 0 : index
    %c0_4 = arith.constant 0 : index
    %9 = vector.load %arg7[%c0_3, %c0_4] : memref<256x128xf32, #tpu.memory_space<vmem>>, vector<256x128xf32>
    %cst = arith.constant dense<0.000000e+00> : vector<256x128xf32>
    %10 = tpu.matmul %4, %8, %cst {dimension_numbers = #tpu.dot_dimension_numbers<[1], [0], [0], [1], [0, 0, 1, 1], [], []>} : vector<256x512xbf16>, vector<512x128xbf16>, vector<256x128xf32> -> vector<256x128xf32>
    %11 = arith.addf %9, %10 : vector<256x128xf32>
    %c0_5 = arith.constant 0 : index
    %c0_6 = arith.constant 0 : index
    %12 = vector.load %arg7[%c0_5, %c0_6] : memref<256x128xf32, #tpu.memory_space<vmem>>, vector<256x128xf32>
    tpu.vector_store %arg7[%c0_5, %c0_6], %11 {strides = array<i32>} : memref<256x128xf32, #tpu.memory_space<vmem>>, vector<256x128xf32>,
    %c0_i32_7 = arith.constant 0 : i32
    %13 = arith.cmpi eq, %arg1, %c0_i32_7 : i32
    %14 = arith.extui %13 : i1 to i32
    %c0_i32_8 = arith.constant 0 : i32
    %15 = arith.cmpi ne, %14, %c0_i32_8 : i32
    scf.if %15 {
      %c0_9 = arith.constant 0 : index
      %c0_10 = arith.constant 0 : index
      %16 = vector.load %arg7[%c0_9, %c0_10] : memref<256x128xf32, #tpu.memory_space<vmem>>, vector<256x128xf32>
      %c0_11 = arith.constant 0 : index
      %c0_12 = arith.constant 0 : index
      %17 = vector.load %arg4[%c0_11, %c0_12] : memref<256x1xf32, #tpu.memory_space<vmem>>, vector<256x1xf32>
      %18 = vector.broadcast %17 : vector<256x1xf32> to vector<256x128xf32>
      %19 = arith.mulf %16, %18 : vector<256x128xf32>
      %c0_13 = arith.constant 0 : index
      %c0_14 = arith.constant 0 : index
      %20 = vector.load %arg5[%c0_13, %c0_14] : memref<1x128xf32, #tpu.memory_space<vmem>>, vector<1x128xf32>
      %21 = vector.broadcast %20 : vector<1x128xf32> to vector<256x128xf32>
      %22 = arith.addf %19, %21 : vector<256x128xf32>
      %cst_15 = arith.constant 0.000000e+00 : f32
      %23 = vector.broadcast %cst_15 : f32 to vector<256x128xf32>
      %24 = arith.maximumf %22, %23 : vector<256x128xf32>
      %c0_16 = arith.constant 0 : index
      %c0_17 = arith.constant 0 : index
      %25 = vector.load %arg6[%c0_16, %c0_17] : memref<256x128xf32, #tpu.memory_space<vmem>>, vector<256x128xf32>
      tpu.vector_store %arg6[%c0_16, %c0_17], %24 {strides = array<i32>} : memref<256x128xf32, #tpu.memory_space<vmem>>, vector<256x128xf32>,
    } else {
    }
    return
  }
  func.func @transform_0(%arg0: i32, %arg1: i32) -> (i32, i32) {
    %c0_i32 = arith.constant 0 : i32
    return %arg0, %arg1 : i32, i32
  }
  func.func @transform_1(%arg0: i32, %arg1: i32) -> (i32, i32) {
    %c0_i32 = arith.constant 0 : i32
    %c0_i32_0 = arith.constant 0 : i32
    %c0_i32_1 = arith.constant 0 : i32
    return %c0_i32, %c0_i32_0 : i32, i32
  }
  func.func @transform_2(%arg0: i32, %arg1: i32) -> (i32, i32) {
    %c0_i32 = arith.constant 0 : i32
    %c0_i32_0 = arith.constant 0 : i32
    return %arg0, %c0_i32 : i32, i32
  }
  func.func @transform_3(%arg0: i32, %arg1: i32) -> (i32, i32) {
    %c0_i32 = arith.constant 0 : i32
    %c0_i32_0 = arith.constant 0 : i32
    %c0_i32_1 = arith.constant 0 : i32
    return %c0_i32, %c0_i32_0 : i32, i32
  }
  func.func @transform_4(%arg0: i32, %arg1: i32) -> (i32, i32) {
    %c0_i32 = arith.constant 0 : i32
    %c0_i32_0 = arith.constant 0 : i32
    return %arg0, %c0_i32 : i32, i32
  }
}

</mosaic_0001>

<llo_original>
// kernel: cross_block_gnn_forward.3
$region0: #{cross_block_gnn_forward.3}
  #allocation0 [shape = 'u32[]', space=smem, size = 0x4, offset = 0x4, fixed_abs, tag = 'smem constant byte address 0x4 - core index']
  #allocation1 [shape = 'u32[144,128]{1,0:T(1,128)}', space=vmem, size = 0x12000, scoped, tag = 'internal scratch']
  #allocation2 [shape = 'f32[256,128]{1,0:T(8,128)}', space=vmem, size = 0x20000, scoped, tag = 'scratch operand']
  %s0 = inlined_call_operand.vmem [shape: s8[512,512], index: 0, kind: input, shape index: {}]
  %s1 = inlined_call_operand.vmem [shape: bf16[512,128], index: 1, kind: input, shape index: {}]
  %s2 = inlined_call_operand.vmem [shape: f32[512,1], index: 2, kind: input, shape index: {}]
  %s3 = inlined_call_operand.vmem [shape: f32[1,128], index: 3, kind: input, shape index: {}]
  %s4 = inlined_call_operand.vmem [shape: f32[512,128], index: 4, kind: output, shape index: {}]
  %s5 = sld [smem:[#allocation0]]
  $region57: #{cross_block_gnn_forward.3} parent=0
    _
  %s7 = ssub.s32 1, %s5
  %s8 = scalar_select 0, %s7, %s5
  loop: start=0, step=1, limit=4
  $region2: #{cross_block_gnn_forward.3} parent=0 // loop_pre_header
    _
  $region3: #{cross_block_gnn_forward.3} parent=0 // loop_header
    %s10 = sphi 0, %s14
    %p11 = scmp.ge.s32.totalorder %s10, 4
    %s17 = sphi 0, %s29
    %s18 = sphi 0, %s25
    %s19 = sphi 0, %s17
    %s20 = sphi 0, %s18
    %s21 = sphi 0, %s19
    %s22 = sphi 0, %s20
    %s34 = sphi 0, %s36
    %s37 = sphi 0, %s34
    %s38 = sphi 0, %s37
    %s54 = sphi 0, %s38
    %s58 = sphi 0, %s58
    %s60 = sphi 0, %s58
    %s61 = sphi 0, %s60
    %s75 = sphi 0, %s61
    %s81 = sphi 0, %s83
    %s84 = sphi 0, %s81
    %s85 = sphi 0, %s84
    %s101 = sphi 0, %s85
    %s105 = sphi 0, %s105
    %s107 = sphi 0, %s105
    %s108 = sphi 0, %s107
    %s122 = sphi 0, %s108
    %s128 = sphi 0, %s130
    %s131 = sphi 0, %s128
    %s132 = sphi 0, %s131
    %s148 = sphi 0, %s132
  $region4: #{cross_block_gnn_forward.3} parent=0 // loop_header_branch
    %13 = sbr.rel (%p11) target = $region8
  $region5: #{cross_block_gnn_forward.3} parent=0 // loop_body
    %s15 = ssub.s32 %s10, 1
    %s16 = ssub.s32 %s10, 2
    %s23 = sadd.s32 1, %s18
    %p24 = scmp.ge.s32.totalorder %s23, 1
    %s25 = scalar_select %p24, 0, %s23
    %s26 = sadd.s32 1, %s17
    %s27 = scalar_select %p24, %s26, %s17
    %p28 = scmp.ge.s32.totalorder %s27, 2
    %s29 = scalar_select %p28, 0, %s27
    %s30 = ssub.s32 %s17, %s29
    %s31 = ssub.s32 %s18, %s25
    %s32 = sor.u32 %s30, %s31
    %p33 = scmp.eq.s32.totalorder %s32, 0
    %s35 = sadd.s32 %s34, 1
    %s36 = scalar_select %p33, %s34, %s35
    %p39 = pneg %p33
    %p40 = scmp.eq.s32.totalorder %s10, 1
    %p41 = por %p39, %p40
    %p42 = scmp.ne.s32.totalorder %s34, %s37
    %p43 = scmp.eq.s32.totalorder %s10, 0
    %p44 = por %p42, %p43
    %p45 = scmp.ne.s32.totalorder %s34, %s37
    %p46 = scmp.eq.s32.totalorder %s15, 1
    %p47 = por %p45, %p46
    %p48 = scmp.ne.s32.totalorder %s37, %s38
    %p49 = scmp.eq.s32.totalorder %s15, 0
    %p50 = por %p48, %p49
    %p51 = scmp.ne.s32.totalorder %s37, %s38
    %p52 = scmp.eq.s32.totalorder %s16, 1
    %p53 = por %p51, %p52
    %p55 = scmp.ne.s32.totalorder %s38, %s54
    %p56 = scmp.eq.s32.totalorder %s16, 0
    %p57 = por %p55, %p56
    %s59 = sadd.s32 %s58, 1
    %p62 = scmp.eq.s32.totalorder %s10, 1
    %p63 = scmp.ne.s32.totalorder %s58, %s60
    %p64 = scmp.eq.s32.totalorder %s10, 0
    %p65 = por %p63, %p64
    %p66 = scmp.ne.s32.totalorder %s58, %s60
    %p67 = scmp.eq.s32.totalorder %s15, 1
    %p68 = por %p66, %p67
    %p69 = scmp.ne.s32.totalorder %s60, %s61
    %p70 = scmp.eq.s32.totalorder %s15, 0
    %p71 = por %p69, %p70
    %p72 = scmp.ne.s32.totalorder %s60, %s61
    %p73 = scmp.eq.s32.totalorder %s16, 1
    %p74 = por %p72, %p73
    %p76 = scmp.ne.s32.totalorder %s61, %s75
    %p77 = scmp.eq.s32.totalorder %s16, 0
    %p78 = por %p76, %p77
    %s79 = ssub.s32 %s17, %s29
    %p80 = scmp.eq.s32.totalorder %s79, 0
    %s82 = sadd.s32 %s81, 1
    %s83 = scalar_select %p80, %s81, %s82
    %p86 = pneg %p80
    %p87 = scmp.eq.s32.totalorder %s10, 1
    %p88 = por %p86, %p87
    %p89 = scmp.ne.s32.totalorder %s81, %s84
    %p90 = scmp.eq.s32.totalorder %s10, 0
    %p91 = por %p89, %p90
    %p92 = scmp.ne.s32.totalorder %s81, %s84
    %p93 = scmp.eq.s32.totalorder %s15, 1
    %p94 = por %p92, %p93
    %p95 = scmp.ne.s32.totalorder %s84, %s85
    %p96 = scmp.eq.s32.totalorder %s15, 0
    %p97 = por %p95, %p96
    %p98 = scmp.ne.s32.totalorder %s84, %s85
    %p99 = scmp.eq.s32.totalorder %s16, 1
    %p100 = por %p98, %p99
    %p102 = scmp.ne.s32.totalorder %s85, %s101
    %p103 = scmp.eq.s32.totalorder %s16, 0
    %p104 = por %p102, %p103
    %s106 = sadd.s32 %s105, 1
    %p109 = scmp.eq.s32.totalorder %s10, 1
    %p110 = scmp.ne.s32.totalorder %s105, %s107
    %p111 = scmp.eq.s32.totalorder %s10, 0
    %p112 = por %p110, %p111
    %p113 = scmp.ne.s32.totalorder %s105, %s107
    %p114 = scmp.eq.s32.totalorder %s15, 1
    %p115 = por %p113, %p114
    %p116 = scmp.ne.s32.totalorder %s107, %s108
    %p117 = scmp.eq.s32.totalorder %s15, 0
    %p118 = por %p116, %p117
    %p119 = scmp.ne.s32.totalorder %s107, %s108
    %p120 = scmp.eq.s32.totalorder %s16, 1
    %p121 = por %p119, %p120
    %p123 = scmp.ne.s32.totalorder %s108, %s122
    %p124 = scmp.eq.s32.totalorder %s16, 0
    %p125 = por %p123, %p124
    %s126 = ssub.s32 %s17, %s29
    %p127 = scmp.eq.s32.totalorder %s126, 0
    %s129 = sadd.s32 %s128, 1
    %s130 = scalar_select %p127, %s128, %s129
    %p133 = pneg %p127
    %p134 = scmp.eq.s32.totalorder %s10, 1
    %p135 = por %p133, %p134
    %p136 = scmp.ne.s32.totalorder %s128, %s131
    %p137 = scmp.eq.s32.totalorder %s10, 0
    %p138 = por %p136, %p137
    %p139 = scmp.ne.s32.totalorder %s128, %s131
    %p140 = scmp.eq.s32.totalorder %s15, 1
    %p141 = por %p139, %p140
    %p142 = scmp.ne.s32.totalorder %s131, %s132
    %p143 = scmp.eq.s32.totalorder %s15, 0
    %p144 = por %p142, %p143
    %p145 = scmp.ne.s32.totalorder %s131, %s132
    %p146 = scmp.eq.s32.totalorder %s16, 1
    %p147 = por %p145, %p146
    %p149 = scmp.ne.s32.totalorder %s132, %s148
    %p150 = scmp.eq.s32.totalorder %s16, 0
    %p151 = por %p149, %p150
    %p152 = scmp.le.s32.totalorder 1, %s10
    %p153 = scmp.lt.s32.totalorder %s10, 3
    %p154 = pnand %p152, %p153
    %p155 = pneg %p154
    // Predicated region
    $region9: #{cross_block_gnn_forward.3} parent=5 // pred_check
      _
    $region10: #{cross_block_gnn_forward.3} parent=5 // pred_check_branch
      %157 = sbr.rel (%p154) target = $region12
    $region11: #{cross_block_gnn_forward.3} parent=5 // pred_region
      %s158 = ssub.s32 %s10, 1
      // Predicated region
      $region13: #{cross_block_gnn_forward.3} parent=11 // pred_check
        %p159 = pneg %p71
      $region14: #{cross_block_gnn_forward.3} parent=11 // pred_check_branch
        %161 = sbr.rel (%p159) target = $region16
      $region15: #{cross_block_gnn_forward.3} parent=11 // pred_region
        _
      $region16: #{cross_block_gnn_forward.3} parent=11 // pred_fallthru
        _
      // Predicated region
      $region17: #{cross_block_gnn_forward.3} parent=11 // pred_check
        %p162 = pneg %p118
      $region18: #{cross_block_gnn_forward.3} parent=11 // pred_check_branch
        %164 = sbr.rel (%p162) target = $region20
      $region19: #{cross_block_gnn_forward.3} parent=11 // pred_region
        _
      $region20: #{cross_block_gnn_forward.3} parent=11 // pred_fallthru
        _
    $region12: #{cross_block_gnn_forward.3} parent=5 // pred_fallthru
      _
    %p165 = scmp.lt.s32.totalorder %s10, 2
    // Predicated region
    $region21: #{cross_block_gnn_forward.3} parent=5 // pred_check
      %p166 = pneg %p165
    $region22: #{cross_block_gnn_forward.3} parent=5 // pred_check_branch
      %168 = sbr.rel (%p166) target = $region24
    $region23: #{cross_block_gnn_forward.3} parent=5 // pred_region
      // Predicated region
      $region25: #{cross_block_gnn_forward.3} parent=23 // pred_check
        %p169 = pneg %p44
      $region26: #{cross_block_gnn_forward.3} parent=23 // pred_check_branch
        %171 = sbr.rel (%p169) target = $region28
      $region27: #{cross_block_gnn_forward.3} parent=23 // pred_region
        %s172 = smul.u32 8, %s17
        %s173 = smul.u32 4, %s18
        %p174 = scmp.lt.s32.totalorder %s172, 15
        %s175 = scalar_select %p174, %s172, 15
        %p176 = scmp.lt.s32.totalorder %s173, 3
        %s177 = scalar_select %p176, %s173, 3
        %s178 = smul.addr %s175, 4
        %s179 = sadd.s32 %s177, %s178
        %s180 = smul.addr %s179, 8
        %s181 = scalar_lea.vmem %s0, %s180
        %s182 = smul.u32 8, %s17
        %s183 = smul.u32 4, %s18
      $region28: #{cross_block_gnn_forward.3} parent=23 // pred_fallthru
        _
      // Predicated region
      $region29: #{cross_block_gnn_forward.3} parent=23 // pred_check
        %p184 = pneg %p91
      $region30: #{cross_block_gnn_forward.3} parent=23 // pred_check_branch
        %186 = sbr.rel (%p184) target = $region32
      $region31: #{cross_block_gnn_forward.3} parent=23 // pred_region
        %s187 = smul.u32 32, %s17
        %p188 = scmp.lt.s32.totalorder %s187, 63
        %s189 = scalar_select %p188, %s187, 63
        %s190 = smul.addr %s189, 8
        %s191 = scalar_lea.vmem %s2, %s190
        %s192 = smul.u32 32, %s17
      $region32: #{cross_block_gnn_forward.3} parent=23 // pred_fallthru
        _
    $region24: #{cross_block_gnn_forward.3} parent=5 // pred_fallthru
      _
    %p193 = scmp.le.s32.totalorder 1, %s10
    %p194 = scmp.lt.s32.totalorder %s10, 3
    %p195 = pnand %p193, %p194
    %p196 = pneg %p195
    // Predicated region
    $region33: #{cross_block_gnn_forward.3} parent=5 // pred_check
      _
    $region34: #{cross_block_gnn_forward.3} parent=5 // pred_check_branch
      %198 = sbr.rel (%p195) target = $region36
    $region35: #{cross_block_gnn_forward.3} parent=5 // pred_region
      %s199 = ssub.s32 %s10, 1
      %s200 = smul.u32 8, %s19
      %s201 = smul.u32 4, %s20
      %p202 = scmp.lt.s32.totalorder %s200, 15
      %s203 = scalar_select %p202, %s200, 15
      %p204 = scmp.lt.s32.totalorder %s201, 3
      %s205 = scalar_select %p204, %s201, 3
      %s206 = smul.addr %s203, 4
      %s207 = sadd.s32 %s205, %s206
      %s208 = smul.addr %s207, 8
      %s209 = scalar_lea.vmem %s0, %s208
      %p210 = pneg %p50
      %p211 = pneg %p47
      %p212 = pneg %p71
      %p213 = pneg %p68
      %s214 = smul.u32 32, %s19
      %p215 = scmp.lt.s32.totalorder %s214, 63
      %s216 = scalar_select %p215, %s214, 63
      %s217 = smul.addr %s216, 8
      %s218 = scalar_lea.vmem %s2, %s217
      %p219 = pneg %p97
      %p220 = pneg %p94
      %p221 = pneg %p118
      %p222 = pneg %p115
      %p223 = pneg %p144
      %p224 = pneg %p141
      %s225 = smul.u32 32, %s19
      %p226 = scmp.lt.s32.totalorder %s225, 63
      %s227 = scalar_select %p226, %s225, 63
      %s228 = smul.addr %s227, 8
      %s229 = scalar_lea.vmem %s4, %s228
      %s230 = smul.u32 8, %s19
      %s231 = smul.u32 4, %s20
      %p232 = scmp.lt.s32.totalorder %s230, 15
      %s233 = scalar_select %p232, %s230, 15
      %p234 = scmp.lt.s32.totalorder %s231, 3
      %s235 = scalar_select %p234, %s231, 3
      %s236 = smul.addr %s233, 4
      %s237 = sadd.s32 %s235, %s236
      %s238 = smul.addr %s237, 8
      %s239 = scalar_lea.vmem %s0, %s238
      %s240 = smul.u32 8, %s19
      %s241 = smul.u32 4, %s20
      %s242 = smul.u32 32, %s19
      %p243 = scmp.lt.s32.totalorder %s242, 63
      %s244 = scalar_select %p243, %s242, 63
      %s245 = smul.addr %s244, 8
      %s246 = scalar_lea.vmem %s2, %s245
      %s247 = smul.u32 32, %s19
      %s248 = smul.u32 32, %s19
      %p249 = scmp.lt.s32.totalorder %s248, 63
      %s250 = scalar_select %p249, %s248, 63
      %s251 = smul.addr %s250, 8
      %s252 = scalar_lea.vmem %s4, %s251
      %s253 = smul.u32 32, %s19
      %p255 = scmp.eq.s32.totalorder %s20, 0
      // Predicated region
      $region37: #{cross_block_gnn_forward.3} parent=35 // pred_check
        %p256 = pneg %p255
      $region38: #{cross_block_gnn_forward.3} parent=35 // pred_check_branch
        %258 = sbr.rel (%p256) target = $region40
      $region39: #{cross_block_gnn_forward.3} parent=35 // pred_region
        %259 = vst [vmem:[#allocation2] sm:$0xff] 0.0
        %260 = vst [vmem:[#allocation2 + $0x8] sm:$0xff] 0.0
        %261 = vst [vmem:[#allocation2 + $0x10] sm:$0xff] 0.0
        %262 = vst [vmem:[#allocation2 + $0x18] sm:$0xff] 0.0
        %263 = vst [vmem:[#allocation2 + $0x20] sm:$0xff] 0.0
        %264 = vst [vmem:[#allocation2 + $0x28] sm:$0xff] 0.0
        %265 = vst [vmem:[#allocation2 + $0x30] sm:$0xff] 0.0
        %266 = vst [vmem:[#allocation2 + $0x38] sm:$0xff] 0.0
        %267 = vst [vmem:[#allocation2 + $0x40] sm:$0xff] 0.0
        %268 = vst [vmem:[#allocation2 + $0x48] sm:$0xff] 0.0
        %269 = vst [vmem:[#allocation2 + $0x50] sm:$0xff] 0.0
        %270 = vst [vmem:[#allocation2 + $0x58] sm:$0xff] 0.0
        %271 = vst [vmem:[#allocation2 + $0x60] sm:$0xff] 0.0
        %272 = vst [vmem:[#allocation2 + $0x68] sm:$0xff] 0.0
        %273 = vst [vmem:[#allocation2 + $0x70] sm:$0xff] 0.0
        %274 = vst [vmem:[#allocation2 + $0x78] sm:$0xff] 0.0
        %275 = vst [vmem:[#allocation2 + $0x80] sm:$0xff] 0.0
        %276 = vst [vmem:[#allocation2 + $0x88] sm:$0xff] 0.0
        %277 = vst [vmem:[#allocation2 + $0x90] sm:$0xff] 0.0
        %278 = vst [vmem:[#allocation2 + $0x98] sm:$0xff] 0.0
        %279 = vst [vmem:[#allocation2 + $0xa0] sm:$0xff] 0.0
        %280 = vst [vmem:[#allocation2 + $0xa8] sm:$0xff] 0.0
        %281 = vst [vmem:[#allocation2 + $0xb0] sm:$0xff] 0.0
        %282 = vst [vmem:[#allocation2 + $0xb8] sm:$0xff] 0.0
        %283 = vst [vmem:[#allocation2 + $0xc0] sm:$0xff] 0.0
        %284 = vst [vmem:[#allocation2 + $0xc8] sm:$0xff] 0.0
        %285 = vst [vmem:[#allocation2 + $0xd0] sm:$0xff] 0.0
        %286 = vst [vmem:[#allocation2 + $0xd8] sm:$0xff] 0.0
        %287 = vst [vmem:[#allocation2 + $0xe0] sm:$0xff] 0.0
        %288 = vst [vmem:[#allocation2 + $0xe8] sm:$0xff] 0.0
        %289 = vst [vmem:[#allocation2 + $0xf0] sm:$0xff] 0.0
        %290 = vst [vmem:[#allocation2 + $0xf8] sm:$0xff] 0.0
      $region40: #{cross_block_gnn_forward.3} parent=35 // pred_fallthru
        _
      %v291 = vld [vmem:[%s239] sm:$0xff]
      %v292 = vld [vmem:[%s239 + $0x8] sm:$0xff]
      %v293 = vld [vmem:[%s239 + $0x10] sm:$0xff]
      %v294 = vld [vmem:[%s239 + $0x18] sm:$0xff]
      %v295 = vld [vmem:[%s239 + $0x20] sm:$0xff]
      %v296 = vld [vmem:[%s239 + $0x28] sm:$0xff]
      %v297 = vld [vmem:[%s239 + $0x30] sm:$0xff]
      %v298 = vld [vmem:[%s239 + $0x38] sm:$0xff]
      %v299 = vld [vmem:[%s239 + $0x40] sm:$0xff]
      %v300 = vld [vmem:[%s239 + $0x48] sm:$0xff]
      %v301 = vld [vmem:[%s239 + $0x50] sm:$0xff]
      %v302 = vld [vmem:[%s239 + $0x58] sm:$0xff]
      %v303 = vld [vmem:[%s239 + $0x60] sm:$0xff]
      %v304 = vld [vmem:[%s239 + $0x68] sm:$0xff]
      %v305 = vld [vmem:[%s239 + $0x70] sm:$0xff]
      %v306 = vld [vmem:[%s239 + $0x78] sm:$0xff]
      %v307 = vld [vmem:[%s239 + $0x80] sm:$0xff]
      %v308 = vld [vmem:[%s239 + $0x88] sm:$0xff]
      %v309 = vld [vmem:[%s239 + $0x90] sm:$0xff]
      %v310 = vld [vmem:[%s239 + $0x98] sm:$0xff]
      %v311 = vld [vmem:[%s239 + $0xa0] sm:$0xff]
      %v312 = vld [vmem:[%s239 + $0xa8] sm:$0xff]
      %v313 = vld [vmem:[%s239 + $0xb0] sm:$0xff]
      %v314 = vld [vmem:[%s239 + $0xb8] sm:$0xff]
      %v315 = vld [vmem:[%s239 + $0xc0] sm:$0xff]
      %v316 = vld [vmem:[%s239 + $0xc8] sm:$0xff]
      %v317 = vld [vmem:[%s239 + $0xd0] sm:$0xff]
      %v318 = vld [vmem:[%s239 + $0xd8] sm:$0xff]
      %v319 = vld [vmem:[%s239 + $0xe0] sm:$0xff]
      %v320 = vld [vmem:[%s239 + $0xe8] sm:$0xff]
      %v321 = vld [vmem:[%s239 + $0xf0] sm:$0xff]
      %v322 = vld [vmem:[%s239 + $0xf8] sm:$0xff]
      %v323 = vunpack.c.l.s8.bf16 %v291
      %v324 = vunpack.c.l.s8.bf16 %v292
      %v325 = vunpack.c.l.s8.bf16 %v293
      %v326 = vunpack.c.l.s8.bf16 %v294
      %v327 = vunpack.c.h.s8.bf16 %v291
      %v328 = vunpack.c.h.s8.bf16 %v292
      %v329 = vunpack.c.h.s8.bf16 %v293
      %v330 = vunpack.c.h.s8.bf16 %v294
      %v331 = vunpack.c.l.s8.bf16 %v295
      %v332 = vunpack.c.l.s8.bf16 %v296
      %v333 = vunpack.c.l.s8.bf16 %v297
      %v334 = vunpack.c.l.s8.bf16 %v298
      %v335 = vunpack.c.h.s8.bf16 %v295
      %v336 = vunpack.c.h.s8.bf16 %v296
      %v337 = vunpack.c.h.s8.bf16 %v297
      %v338 = vunpack.c.h.s8.bf16 %v298
      %v339 = vunpack.c.l.s8.bf16 %v299
      %v340 = vunpack.c.l.s8.bf16 %v300
      %v341 = vunpack.c.l.s8.bf16 %v301
      %v342 = vunpack.c.l.s8.bf16 %v302
      %v343 = vunpack.c.h.s8.bf16 %v299
      %v344 = vunpack.c.h.s8.bf16 %v300
      %v345 = vunpack.c.h.s8.bf16 %v301
      %v346 = vunpack.c.h.s8.bf16 %v302
      %v347 = vunpack.c.l.s8.bf16 %v303
      %v348 = vunpack.c.l.s8.bf16 %v304
      %v349 = vunpack.c.l.s8.bf16 %v305
      %v350 = vunpack.c.l.s8.bf16 %v306
      %v351 = vunpack.c.h.s8.bf16 %v303
      %v352 = vunpack.c.h.s8.bf16 %v304
      %v353 = vunpack.c.h.s8.bf16 %v305
      %v354 = vunpack.c.h.s8.bf16 %v306
      %v355 = vunpack.c.l.s8.bf16 %v307
      %v356 = vunpack.c.l.s8.bf16 %v308
      %v357 = vunpack.c.l.s8.bf16 %v309
      %v358 = vunpack.c.l.s8.bf16 %v310
      %v359 = vunpack.c.h.s8.bf16 %v307
      %v360 = vunpack.c.h.s8.bf16 %v308
      %v361 = vunpack.c.h.s8.bf16 %v309
      %v362 = vunpack.c.h.s8.bf16 %v310
      %v363 = vunpack.c.l.s8.bf16 %v311
      %v364 = vunpack.c.l.s8.bf16 %v312
      %v365 = vunpack.c.l.s8.bf16 %v313
      %v366 = vunpack.c.l.s8.bf16 %v314
      %v367 = vunpack.c.h.s8.bf16 %v311
      %v368 = vunpack.c.h.s8.bf16 %v312
      %v369 = vunpack.c.h.s8.bf16 %v313
      %v370 = vunpack.c.h.s8.bf16 %v314
      %v371 = vunpack.c.l.s8.bf16 %v315
      %v372 = vunpack.c.l.s8.bf16 %v316
      %v373 = vunpack.c.l.s8.bf16 %v317
      %v374 = vunpack.c.l.s8.bf16 %v318
      %v375 = vunpack.c.h.s8.bf16 %v315
      %v376 = vunpack.c.h.s8.bf16 %v316
      %v377 = vunpack.c.h.s8.bf16 %v317
      %v378 = vunpack.c.h.s8.bf16 %v318
      %v379 = vunpack.c.l.s8.bf16 %v319
      %v380 = vunpack.c.l.s8.bf16 %v320
      %v381 = vunpack.c.l.s8.bf16 %v321
      %v382 = vunpack.c.l.s8.bf16 %v322
      %v383 = vunpack.c.h.s8.bf16 %v319
      %v384 = vunpack.c.h.s8.bf16 %v320
      %v385 = vunpack.c.h.s8.bf16 %v321
      %v386 = vunpack.c.h.s8.bf16 %v322
      %s387 = smul.u32 %s20, 512
      %s388 = sshra.s32 %s387, 3
      %s389 = sand.u32 %s387, 7
      %s390 = smul.addr %s388, 4
      %s391 = scalar_lea.vmem %s1, %s390
      %v392 = vld [vmem:[%s391] sm:$0xf]
      %v393 = vld [vmem:[%s391 + $0x4] sm:$0xf]
      %v394 = vld [vmem:[%s391 + $0x8] sm:$0xf]
      %v395 = vld [vmem:[%s391 + $0xc] sm:$0xf]
      %v396 = vld [vmem:[%s391 + $0x10] sm:$0xf]
      %v397 = vld [vmem:[%s391 + $0x14] sm:$0xf]
      %v398 = vld [vmem:[%s391 + $0x18] sm:$0xf]
      %v399 = vld [vmem:[%s391 + $0x1c] sm:$0xf]
      %v400 = vld [vmem:[%s391 + $0x20] sm:$0xf]
      %v401 = vld [vmem:[%s391 + $0x24] sm:$0xf]
      %v402 = vld [vmem:[%s391 + $0x28] sm:$0xf]
      %v403 = vld [vmem:[%s391 + $0x2c] sm:$0xf]
      %v404 = vld [vmem:[%s391 + $0x30] sm:$0xf]
      %v405 = vld [vmem:[%s391 + $0x34] sm:$0xf]
      %v406 = vld [vmem:[%s391 + $0x38] sm:$0xf]
      %v407 = vld [vmem:[%s391 + $0x3c] sm:$0xf]
      %v408 = vld [vmem:[%s391 + $0x40] sm:$0xf]
      %v409 = vld [vmem:[%s391 + $0x44] sm:$0xf]
      %v410 = vld [vmem:[%s391 + $0x48] sm:$0xf]
      %v411 = vld [vmem:[%s391 + $0x4c] sm:$0xf]
      %v412 = vld [vmem:[%s391 + $0x50] sm:$0xf]
      %v413 = vld [vmem:[%s391 + $0x54] sm:$0xf]
      %v414 = vld [vmem:[%s391 + $0x58] sm:$0xf]
      %v415 = vld [vmem:[%s391 + $0x5c] sm:$0xf]
      %v416 = vld [vmem:[%s391 + $0x60] sm:$0xf]
      %v417 = vld [vmem:[%s391 + $0x64] sm:$0xf]
      %v418 = vld [vmem:[%s391 + $0x68] sm:$0xf]
      %v419 = vld [vmem:[%s391 + $0x6c] sm:$0xf]
      %v420 = vld [vmem:[%s391 + $0x70] sm:$0xf]
      %v421 = vld [vmem:[%s391 + $0x74] sm:$0xf]
      %v422 = vld [vmem:[%s391 + $0x78] sm:$0xf]
      %v423 = vld [vmem:[%s391 + $0x7c] sm:$0xf]
      %v424 = vld [vmem:[%s391 + $0x80] sm:$0xf]
      %v425 = vld [vmem:[%s391 + $0x84] sm:$0xf]
      %v426 = vld [vmem:[%s391 + $0x88] sm:$0xf]
      %v427 = vld [vmem:[%s391 + $0x8c] sm:$0xf]
      %v428 = vld [vmem:[%s391 + $0x90] sm:$0xf]
      %v429 = vld [vmem:[%s391 + $0x94] sm:$0xf]
      %v430 = vld [vmem:[%s391 + $0x98] sm:$0xf]
      %v431 = vld [vmem:[%s391 + $0x9c] sm:$0xf]
      %v432 = vld [vmem:[%s391 + $0xa0] sm:$0xf]
      %v433 = vld [vmem:[%s391 + $0xa4] sm:$0xf]
      %v434 = vld [vmem:[%s391 + $0xa8] sm:$0xf]
      %v435 = vld [vmem:[%s391 + $0xac] sm:$0xf]
      %v436 = vld [vmem:[%s391 + $0xb0] sm:$0xf]
      %v437 = vld [vmem:[%s391 + $0xb4] sm:$0xf]
      %v438 = vld [vmem:[%s391 + $0xb8] sm:$0xf]
      %v439 = vld [vmem:[%s391 + $0xbc] sm:$0xf]
      %v440 = vld [vmem:[%s391 + $0xc0] sm:$0xf]
      %v441 = vld [vmem:[%s391 + $0xc4] sm:$0xf]
      %v442 = vld [vmem:[%s391 + $0xc8] sm:$0xf]
      %v443 = vld [vmem:[%s391 + $0xcc] sm:$0xf]
      %v444 = vld [vmem:[%s391 + $0xd0] sm:$0xf]
      %v445 = vld [vmem:[%s391 + $0xd4] sm:$0xf]
      %v446 = vld [vmem:[%s391 + $0xd8] sm:$0xf]
      %v447 = vld [vmem:[%s391 + $0xdc] sm:$0xf]
      %v448 = vld [vmem:[%s391 + $0xe0] sm:$0xf]
      %v449 = vld [vmem:[%s391 + $0xe4] sm:$0xf]
      %v450 = vld [vmem:[%s391 + $0xe8] sm:$0xf]
      %v451 = vld [vmem:[%s391 + $0xec] sm:$0xf]
      %v452 = vld [vmem:[%s391 + $0xf0] sm:$0xf]
      %v453 = vld [vmem:[%s391 + $0xf4] sm:$0xf]
      %v454 = vld [vmem:[%s391 + $0xf8] sm:$0xf]
      %v455 = vld [vmem:[%s391 + $0xfc] sm:$0xf]
      %v456 = vld [vmem:[#allocation2] sm:$0xff]
      %v457 = vld [vmem:[#allocation2 + $0x8] sm:$0xff]
      %v458 = vld [vmem:[#allocation2 + $0x10] sm:$0xff]
      %v459 = vld [vmem:[#allocation2 + $0x18] sm:$0xff]
      %v460 = vld [vmem:[#allocation2 + $0x20] sm:$0xff]
      %v461 = vld [vmem:[#allocation2 + $0x28] sm:$0xff]
      %v462 = vld [vmem:[#allocation2 + $0x30] sm:$0xff]
      %v463 = vld [vmem:[#allocation2 + $0x38] sm:$0xff]
      %v464 = vld [vmem:[#allocation2 + $0x40] sm:$0xff]
      %v465 = vld [vmem:[#allocation2 + $0x48] sm:$0xff]
      %v466 = vld [vmem:[#allocation2 + $0x50] sm:$0xff]
      %v467 = vld [vmem:[#allocation2 + $0x58] sm:$0xff]
      %v468 = vld [vmem:[#allocation2 + $0x60] sm:$0xff]
      %v469 = vld [vmem:[#allocation2 + $0x68] sm:$0xff]
      %v470 = vld [vmem:[#allocation2 + $0x70] sm:$0xff]
      %v471 = vld [vmem:[#allocation2 + $0x78] sm:$0xff]
      %v472 = vld [vmem:[#allocation2 + $0x80] sm:$0xff]
      %v473 = vld [vmem:[#allocation2 + $0x88] sm:$0xff]
      %v474 = vld [vmem:[#allocation2 + $0x90] sm:$0xff]
      %v475 = vld [vmem:[#allocation2 + $0x98] sm:$0xff]
      %v476 = vld [vmem:[#allocation2 + $0xa0] sm:$0xff]
      %v477 = vld [vmem:[#allocation2 + $0xa8] sm:$0xff]
      %v478 = vld [vmem:[#allocation2 + $0xb0] sm:$0xff]
      %v479 = vld [vmem:[#allocation2 + $0xb8] sm:$0xff]
      %v480 = vld [vmem:[#allocation2 + $0xc0] sm:$0xff]
      %v481 = vld [vmem:[#allocation2 + $0xc8] sm:$0xff]
      %v482 = vld [vmem:[#allocation2 + $0xd0] sm:$0xff]
      %v483 = vld [vmem:[#allocation2 + $0xd8] sm:$0xff]
      %v484 = vld [vmem:[#allocation2 + $0xe0] sm:$0xff]
      %v485 = vld [vmem:[#allocation2 + $0xe8] sm:$0xff]
      %v486 = vld [vmem:[#allocation2 + $0xf0] sm:$0xff]
      %v487 = vld [vmem:[#allocation2 + $0xf8] sm:$0xff]
      %v552 = vunpack.c.l.b16 %v392
      %v553 = vunpack.c.l.b16 %v393
      %v554 = vunpack.c.l.b16 %v394
      %v555 = vunpack.c.l.b16 %v395
      %v556 = vunpack.c.l.b16 %v396
      %v557 = vunpack.c.l.b16 %v397
      %v558 = vunpack.c.l.b16 %v398
      %v559 = vunpack.c.l.b16 %v399
      %v560 = vunpack.c.l.b16 %v400
      %v561 = vunpack.c.l.b16 %v401
      %v562 = vunpack.c.l.b16 %v402
      %v563 = vunpack.c.l.b16 %v403
      %v564 = vunpack.c.l.b16 %v404
      %v565 = vunpack.c.l.b16 %v405
      %v566 = vunpack.c.l.b16 %v406
      %v567 = vunpack.c.l.b16 %v407
      %v568 = vunpack.c.l.b16 %v408
      %v569 = vunpack.c.l.b16 %v409
      %v570 = vunpack.c.l.b16 %v410
      %v571 = vunpack.c.l.b16 %v411
      %v572 = vunpack.c.l.b16 %v412
      %v573 = vunpack.c.l.b16 %v413
      %v574 = vunpack.c.l.b16 %v414
      %v575 = vunpack.c.l.b16 %v415
      %v576 = vunpack.c.l.b16 %v416
      %v577 = vunpack.c.l.b16 %v417
      %v578 = vunpack.c.l.b16 %v418
      %v579 = vunpack.c.l.b16 %v419
      %v580 = vunpack.c.l.b16 %v420
      %v581 = vunpack.c.l.b16 %v421
      %v582 = vunpack.c.l.b16 %v422
      %v583 = vunpack.c.l.b16 %v423
      %v584 = vunpack.c.l.b16 %v424
      %v585 = vunpack.c.l.b16 %v425
      %v586 = vunpack.c.l.b16 %v426
      %v587 = vunpack.c.l.b16 %v427
      %v588 = vunpack.c.l.b16 %v428
      %v589 = vunpack.c.l.b16 %v429
      %v590 = vunpack.c.l.b16 %v430
      %v591 = vunpack.c.l.b16 %v431
      %v592 = vunpack.c.l.b16 %v432
      %v593 = vunpack.c.l.b16 %v433
      %v594 = vunpack.c.l.b16 %v434
      %v595 = vunpack.c.l.b16 %v435
      %v596 = vunpack.c.l.b16 %v436
      %v597 = vunpack.c.l.b16 %v437
      %v598 = vunpack.c.l.b16 %v438
      %v599 = vunpack.c.l.b16 %v439
      %v600 = vunpack.c.l.b16 %v440
      %v601 = vunpack.c.l.b16 %v441
      %v602 = vunpack.c.l.b16 %v442
      %v603 = vunpack.c.l.b16 %v443
      %v604 = vunpack.c.l.b16 %v444
      %v605 = vunpack.c.l.b16 %v445
      %v606 = vunpack.c.l.b16 %v446
      %v607 = vunpack.c.l.b16 %v447
      %v608 = vunpack.c.l.b16 %v448
      %v609 = vunpack.c.l.b16 %v449
      %v610 = vunpack.c.l.b16 %v450
      %v611 = vunpack.c.l.b16 %v451
      %v612 = vunpack.c.l.b16 %v452
      %v613 = vunpack.c.l.b16 %v453
      %v614 = vunpack.c.l.b16 %v454
      %v615 = vunpack.c.l.b16 %v455
      %v616 = vpack.c.b16 %v553, %v552
      %v617 = vpack.c.b16 %v555, %v554
      %v618 = vpack.c.b16 %v557, %v556
      %v619 = vpack.c.b16 %v559, %v558
      %v620 = vpack.c.b16 %v561, %v560
      %v621 = vpack.c.b16 %v563, %v562
      %v622 = vpack.c.b16 %v565, %v564
      %v623 = vpack.c.b16 %v567, %v566
      %v624 = vpack.c.b16 %v569, %v568
      %v625 = vpack.c.b16 %v571, %v570
      %v626 = vpack.c.b16 %v573, %v572
      %v627 = vpack.c.b16 %v575, %v574
      %v628 = vpack.c.b16 %v577, %v576
      %v629 = vpack.c.b16 %v579, %v578
      %v630 = vpack.c.b16 %v581, %v580
      %v631 = vpack.c.b16 %v583, %v582
      %v632 = vpack.c.b16 %v585, %v584
      %v633 = vpack.c.b16 %v587, %v586
      %v634 = vpack.c.b16 %v589, %v588
      %v635 = vpack.c.b16 %v591, %v590
      %v636 = vpack.c.b16 %v593, %v592
      %v637 = vpack.c.b16 %v595, %v594
      %v638 = vpack.c.b16 %v597, %v596
      %v639 = vpack.c.b16 %v599, %v598
      %v640 = vpack.c.b16 %v601, %v600
      %v641 = vpack.c.b16 %v603, %v602
      %v642 = vpack.c.b16 %v605, %v604
      %v643 = vpack.c.b16 %v607, %v606
      %v644 = vpack.c.b16 %v609, %v608
      %v645 = vpack.c.b16 %v611, %v610
      %v646 = vpack.c.b16 %v613, %v612
      %v647 = vpack.c.b16 %v615, %v614
      %680 = vmatprep.subr.bf16.mxu0 0
      %681 = vmatpush1.bf16.msra.mxu0 %v623
      %682 = vmatprep.subr.bf16.mxu0 0
      %683 = vmatpush1.bf16.msra.mxu0 %v622
      %684 = vmatprep.subr.bf16.mxu0 0
      %685 = vmatpush1.bf16.msra.mxu0 %v621
      %686 = vmatprep.subr.bf16.mxu0 0
      %687 = vmatpush1.bf16.msra.mxu0 %v620
      %688 = vmatprep.subr.bf16.mxu0 0
      %689 = vmatpush1.bf16.msra.mxu0 %v619
      %690 = vmatprep.subr.bf16.mxu0 0
      %691 = vmatpush1.bf16.msra.mxu0 %v618
      %692 = vmatprep.subr.bf16.mxu0 0
      %693 = vmatpush1.bf16.msra.mxu0 %v617
      %694 = vmatprep.subr.bf16.mxu0 0
      %695 = vmatpush1.bf16.msra.mxu0 %v616
      %696 = vmatprep.subr.bf16.mxu0 0
      %697 = vmatpush2.bf16.msra.mxu0 %v631
      %698 = vmatprep.subr.bf16.mxu0 0
      %699 = vmatpush2.bf16.msra.mxu0 %v630
      %700 = vmatprep.subr.bf16.mxu0 0
      %701 = vmatpush2.bf16.msra.mxu0 %v629
      %702 = vmatprep.subr.bf16.mxu0 0
      %703 = vmatpush2.bf16.msra.mxu0 %v628
      %704 = vmatprep.subr.bf16.mxu0 0
      %705 = vmatpush2.bf16.msra.mxu0 %v627
      %706 = vmatprep.subr.bf16.mxu0 0
      %707 = vmatpush2.bf16.msra.mxu0 %v626
      %708 = vmatprep.subr.bf16.mxu0 0
      %709 = vmatpush2.bf16.msra.mxu0 %v625
      %710 = vmatprep.subr.bf16.mxu0 0
      %711 = vmatpush2.bf16.msra.mxu0 %v624
      %712 = vmatprep.mubr.bf16.mxu0 %v324
      %713 = vmatmul.mubr.bf16.gmra.mxu0 %v323
      %v714 = vpop.f32.mrf.mxu0
      %v715 = vadd.f32 0.0, %v714
      %v716 = vpop.f32.mrf.mxu0
      %v717 = vpop.f32.mrf.mxu0
      %v718 = vadd.f32 0.0, %v717
      %v719 = vpop.f32.mrf.mxu0
      %720 = vmatprep.mubr.bf16.mxu0 %v328
      %721 = vmatmul.mubr.bf16.gmra.mxu0 %v327
      %v722 = vpop.f32.mrf.mxu0
      %v723 = vadd.f32 0.0, %v722
      %v724 = vpop.f32.mrf.mxu0
      %v725 = vpop.f32.mrf.mxu0
      %v726 = vadd.f32 0.0, %v725
      %v727 = vpop.f32.mrf.mxu0
      %728 = vmatprep.mubr.bf16.mxu0 %v332
      %729 = vmatmul.mubr.bf16.gmra.mxu0 %v331
      %v730 = vpop.f32.mrf.mxu0
      %v731 = vadd.f32 0.0, %v730
      %v732 = vpop.f32.mrf.mxu0
      %v733 = vpop.f32.mrf.mxu0
      %v734 = vadd.f32 0.0, %v733
      %v735 = vpop.f32.mrf.mxu0
      %736 = vmatprep.mubr.bf16.mxu0 %v336
      %737 = vmatmul.mubr.bf16.gmra.mxu0 %v335
      %v738 = vpop.f32.mrf.mxu0
      %v739 = vadd.f32 0.0, %v738
      %v740 = vpop.f32.mrf.mxu0
      %v741 = vpop.f32.mrf.mxu0
      %v742 = vadd.f32 0.0, %v741
      %v743 = vpop.f32.mrf.mxu0
      %744 = vmatprep.mubr.bf16.mxu0 %v340
      %745 = vmatmul.mubr.bf16.gmra.mxu0 %v339
      %v746 = vpop.f32.mrf.mxu0
      %v747 = vadd.f32 0.0, %v746
      %v748 = vpop.f32.mrf.mxu0
      %v749 = vpop.f32.mrf.mxu0
      %v750 = vadd.f32 0.0, %v749
      %v751 = vpop.f32.mrf.mxu0
      %752 = vmatprep.mubr.bf16.mxu0 %v344
      %753 = vmatmul.mubr.bf16.gmra.mxu0 %v343
      %v754 = vpop.f32.mrf.mxu0
      %v755 = vadd.f32 0.0, %v754
      %v756 = vpop.f32.mrf.mxu0
      %v757 = vpop.f32.mrf.mxu0
      %v758 = vadd.f32 0.0, %v757
      %v759 = vpop.f32.mrf.mxu0
      %760 = vmatprep.mubr.bf16.mxu0 %v348
      %761 = vmatmul.mubr.bf16.gmra.mxu0 %v347
      %v762 = vpop.f32.mrf.mxu0
      %v763 = vadd.f32 0.0, %v762
      %v764 = vpop.f32.mrf.mxu0
      %v765 = vpop.f32.mrf.mxu0
      %v766 = vadd.f32 0.0, %v765
      %v767 = vpop.f32.mrf.mxu0
      %768 = vmatprep.mubr.bf16.mxu0 %v352
      %769 = vmatmul.mubr.bf16.gmra.mxu0 %v351
      %v770 = vpop.f32.mrf.mxu0
      %v771 = vadd.f32 0.0, %v770
      %v772 = vpop.f32.mrf.mxu0
      %v773 = vpop.f32.mrf.mxu0
      %v774 = vadd.f32 0.0, %v773
      %v775 = vpop.f32.mrf.mxu0
      %776 = vmatprep.mubr.bf16.mxu0 %v356
      %777 = vmatmul.mubr.bf16.gmra.mxu0 %v355
      %v778 = vpop.f32.mrf.mxu0
      %v779 = vadd.f32 0.0, %v778
      %v780 = vpop.f32.mrf.mxu0
      %v781 = vpop.f32.mrf.mxu0
      %v782 = vadd.f32 0.0, %v781
      %v783 = vpop.f32.mrf.mxu0
      %784 = vmatprep.mubr.bf16.mxu0 %v360
      %785 = vmatmul.mubr.bf16.gmra.mxu0 %v359
      %v786 = vpop.f32.mrf.mxu0
      %v787 = vadd.f32 0.0, %v786
      %v788 = vpop.f32.mrf.mxu0
      %v789 = vpop.f32.mrf.mxu0
      %v790 = vadd.f32 0.0, %v789
      %v791 = vpop.f32.mrf.mxu0
      %792 = vmatprep.mubr.bf16.mxu0 %v364
      %793 = vmatmul.mubr.bf16.gmra.mxu0 %v363
      %v794 = vpop.f32.mrf.mxu0
      %v795 = vadd.f32 0.0, %v794
      %v796 = vpop.f32.mrf.mxu0
      %v797 = vpop.f32.mrf.mxu0
      %v798 = vadd.f32 0.0, %v797
      %v799 = vpop.f32.mrf.mxu0
      %800 = vmatprep.mubr.bf16.mxu0 %v368
      %801 = vmatmul.mubr.bf16.gmra.mxu0 %v367
      %v802 = vpop.f32.mrf.mxu0
      %v803 = vadd.f32 0.0, %v802
      %v804 = vpop.f32.mrf.mxu0
      %v805 = vpop.f32.mrf.mxu0
      %v806 = vadd.f32 0.0, %v805
      %v807 = vpop.f32.mrf.mxu0
      %808 = vmatprep.mubr.bf16.mxu0 %v372
      %809 = vmatmul.mubr.bf16.gmra.mxu0 %v371
      %v810 = vpop.f32.mrf.mxu0
      %v811 = vadd.f32 0.0, %v810
      %v812 = vpop.f32.mrf.mxu0
      %v813 = vpop.f32.mrf.mxu0
      %v814 = vadd.f32 0.0, %v813
      %v815 = vpop.f32.mrf.mxu0
      %816 = vmatprep.mubr.bf16.mxu0 %v376
      %817 = vmatmul.mubr.bf16.gmra.mxu0 %v375
      %v818 = vpop.f32.mrf.mxu0
      %v819 = vadd.f32 0.0, %v818
      %v820 = vpop.f32.mrf.mxu0
      %v821 = vpop.f32.mrf.mxu0
      %v822 = vadd.f32 0.0, %v821
      %v823 = vpop.f32.mrf.mxu0
      %824 = vmatprep.mubr.bf16.mxu0 %v380
      %825 = vmatmul.mubr.bf16.gmra.mxu0 %v379
      %v826 = vpop.f32.mrf.mxu0
      %v827 = vadd.f32 0.0, %v826
      %v828 = vpop.f32.mrf.mxu0
      %v829 = vpop.f32.mrf.mxu0
      %v830 = vadd.f32 0.0, %v829
      %v831 = vpop.f32.mrf.mxu0
      %832 = vmatprep.mubr.bf16.mxu0 %v384
      %833 = vmatmul.mubr.bf16.gmra.mxu0 %v383
      %v834 = vpop.f32.mrf.mxu0
      %v835 = vadd.f32 0.0, %v834
      %v836 = vpop.f32.mrf.mxu0
      %v837 = vpop.f32.mrf.mxu0
      %v838 = vadd.f32 0.0, %v837
      %v839 = vpop.f32.mrf.mxu0
      %840 = vdwg.mxu0
      %841 = vmatprep.subr.bf16.mxu0 0
      %842 = vmatpush1.bf16.msra.mxu0 %v639
      %843 = vmatprep.subr.bf16.mxu0 0
      %844 = vmatpush1.bf16.msra.mxu0 %v638
      %845 = vmatprep.subr.bf16.mxu0 0
      %846 = vmatpush1.bf16.msra.mxu0 %v637
      %847 = vmatprep.subr.bf16.mxu0 0
      %848 = vmatpush1.bf16.msra.mxu0 %v636
      %849 = vmatprep.subr.bf16.mxu0 0
      %850 = vmatpush1.bf16.msra.mxu0 %v635
      %851 = vmatprep.subr.bf16.mxu0 0
      %852 = vmatpush1.bf16.msra.mxu0 %v634
      %853 = vmatprep.subr.bf16.mxu0 0
      %854 = vmatpush1.bf16.msra.mxu0 %v633
      %855 = vmatprep.subr.bf16.mxu0 0
      %856 = vmatpush1.bf16.msra.mxu0 %v632
      %857 = vmatprep.subr.bf16.mxu0 0
      %858 = vmatpush2.bf16.msra.mxu0 %v647
      %859 = vmatprep.subr.bf16.mxu0 0
      %860 = vmatpush2.bf16.msra.mxu0 %v646
      %861 = vmatprep.subr.bf16.mxu0 0
      %862 = vmatpush2.bf16.msra.mxu0 %v645
      %863 = vmatprep.subr.bf16.mxu0 0
      %864 = vmatpush2.bf16.msra.mxu0 %v644
      %865 = vmatprep.subr.bf16.mxu0 0
      %866 = vmatpush2.bf16.msra.mxu0 %v643
      %867 = vmatprep.subr.bf16.mxu0 0
      %868 = vmatpush2.bf16.msra.mxu0 %v642
      %869 = vmatprep.subr.bf16.mxu0 0
      %870 = vmatpush2.bf16.msra.mxu0 %v641
      %871 = vmatprep.subr.bf16.mxu0 0
      %872 = vmatpush2.bf16.msra.mxu0 %v640
      %873 = vmatprep.mubr.bf16.mxu0 %v326
      %874 = vmatmul.mubr.bf16.gmra.mxu0 %v325
      %v875 = vpop.f32.mrf.mxu0
      %v876 = vadd.f32 %v715, %v875
      %v877 = vpop.f32.mrf.mxu0
      %v878 = vpop.f32.mrf.mxu0
      %v879 = vadd.f32 %v718, %v878
      %v880 = vpop.f32.mrf.mxu0
      %881 = vmatprep.mubr.bf16.mxu0 %v330
      %882 = vmatmul.mubr.bf16.gmra.mxu0 %v329
      %v883 = vpop.f32.mrf.mxu0
      %v884 = vadd.f32 %v723, %v883
      %v885 = vpop.f32.mrf.mxu0
      %v886 = vpop.f32.mrf.mxu0
      %v887 = vadd.f32 %v726, %v886
      %v888 = vpop.f32.mrf.mxu0
      %889 = vmatprep.mubr.bf16.mxu0 %v334
      %890 = vmatmul.mubr.bf16.gmra.mxu0 %v333
      %v891 = vpop.f32.mrf.mxu0
      %v892 = vadd.f32 %v731, %v891
      %v893 = vpop.f32.mrf.mxu0
      %v894 = vpop.f32.mrf.mxu0
      %v895 = vadd.f32 %v734, %v894
      %v896 = vpop.f32.mrf.mxu0
      %897 = vmatprep.mubr.bf16.mxu0 %v338
      %898 = vmatmul.mubr.bf16.gmra.mxu0 %v337
      %v899 = vpop.f32.mrf.mxu0
      %v900 = vadd.f32 %v739, %v899
      %v901 = vpop.f32.mrf.mxu0
      %v902 = vpop.f32.mrf.mxu0
      %v903 = vadd.f32 %v742, %v902
      %v904 = vpop.f32.mrf.mxu0
      %905 = vmatprep.mubr.bf16.mxu0 %v342
      %906 = vmatmul.mubr.bf16.gmra.mxu0 %v341
      %v907 = vpop.f32.mrf.mxu0
      %v908 = vadd.f32 %v747, %v907
      %v909 = vpop.f32.mrf.mxu0
      %v910 = vpop.f32.mrf.mxu0
      %v911 = vadd.f32 %v750, %v910
      %v912 = vpop.f32.mrf.mxu0
      %913 = vmatprep.mubr.bf16.mxu0 %v346
      %914 = vmatmul.mubr.bf16.gmra.mxu0 %v345
      %v915 = vpop.f32.mrf.mxu0
      %v916 = vadd.f32 %v755, %v915
      %v917 = vpop.f32.mrf.mxu0
      %v918 = vpop.f32.mrf.mxu0
      %v919 = vadd.f32 %v758, %v918
      %v920 = vpop.f32.mrf.mxu0
      %921 = vmatprep.mubr.bf16.mxu0 %v350
      %922 = vmatmul.mubr.bf16.gmra.mxu0 %v349
      %v923 = vpop.f32.mrf.mxu0
      %v924 = vadd.f32 %v763, %v923
      %v925 = vpop.f32.mrf.mxu0
      %v926 = vpop.f32.mrf.mxu0
      %v927 = vadd.f32 %v766, %v926
      %v928 = vpop.f32.mrf.mxu0
      %929 = vmatprep.mubr.bf16.mxu0 %v354
      %930 = vmatmul.mubr.bf16.gmra.mxu0 %v353
      %v931 = vpop.f32.mrf.mxu0
      %v932 = vadd.f32 %v771, %v931
      %v933 = vpop.f32.mrf.mxu0
      %v934 = vpop.f32.mrf.mxu0
      %v935 = vadd.f32 %v774, %v934
      %v936 = vpop.f32.mrf.mxu0
      %937 = vmatprep.mubr.bf16.mxu0 %v358
      %938 = vmatmul.mubr.bf16.gmra.mxu0 %v357
      %v939 = vpop.f32.mrf.mxu0
      %v940 = vadd.f32 %v779, %v939
      %v941 = vpop.f32.mrf.mxu0
      %v942 = vpop.f32.mrf.mxu0
      %v943 = vadd.f32 %v782, %v942
      %v944 = vpop.f32.mrf.mxu0
      %945 = vmatprep.mubr.bf16.mxu0 %v362
      %946 = vmatmul.mubr.bf16.gmra.mxu0 %v361
      %v947 = vpop.f32.mrf.mxu0
      %v948 = vadd.f32 %v787, %v947
      %v949 = vpop.f32.mrf.mxu0
      %v950 = vpop.f32.mrf.mxu0
      %v951 = vadd.f32 %v790, %v950
      %v952 = vpop.f32.mrf.mxu0
      %953 = vmatprep.mubr.bf16.mxu0 %v366
      %954 = vmatmul.mubr.bf16.gmra.mxu0 %v365
      %v955 = vpop.f32.mrf.mxu0
      %v956 = vadd.f32 %v795, %v955
      %v957 = vpop.f32.mrf.mxu0
      %v958 = vpop.f32.mrf.mxu0
      %v959 = vadd.f32 %v798, %v958
      %v960 = vpop.f32.mrf.mxu0
      %961 = vmatprep.mubr.bf16.mxu0 %v370
      %962 = vmatmul.mubr.bf16.gmra.mxu0 %v369
      %v963 = vpop.f32.mrf.mxu0
      %v964 = vadd.f32 %v803, %v963
      %v965 = vpop.f32.mrf.mxu0
      %v966 = vpop.f32.mrf.mxu0
      %v967 = vadd.f32 %v806, %v966
      %v968 = vpop.f32.mrf.mxu0
      %969 = vmatprep.mubr.bf16.mxu0 %v374
      %970 = vmatmul.mubr.bf16.gmra.mxu0 %v373
      %v971 = vpop.f32.mrf.mxu0
      %v972 = vadd.f32 %v811, %v971
      %v973 = vpop.f32.mrf.mxu0
      %v974 = vpop.f32.mrf.mxu0
      %v975 = vadd.f32 %v814, %v974
      %v976 = vpop.f32.mrf.mxu0
      %977 = vmatprep.mubr.bf16.mxu0 %v378
      %978 = vmatmul.mubr.bf16.gmra.mxu0 %v377
      %v979 = vpop.f32.mrf.mxu0
      %v980 = vadd.f32 %v819, %v979
      %v981 = vpop.f32.mrf.mxu0
      %v982 = vpop.f32.mrf.mxu0
      %v983 = vadd.f32 %v822, %v982
      %v984 = vpop.f32.mrf.mxu0
      %985 = vmatprep.mubr.bf16.mxu0 %v382
      %986 = vmatmul.mubr.bf16.gmra.mxu0 %v381
      %v987 = vpop.f32.mrf.mxu0
      %v988 = vadd.f32 %v827, %v987
      %v989 = vpop.f32.mrf.mxu0
      %v990 = vpop.f32.mrf.mxu0
      %v991 = vadd.f32 %v830, %v990
      %v992 = vpop.f32.mrf.mxu0
      %993 = vmatprep.mubr.bf16.mxu0 %v386
      %994 = vmatmul.mubr.bf16.gmra.mxu0 %v385
      %v995 = vpop.f32.mrf.mxu0
      %v996 = vadd.f32 %v835, %v995
      %v997 = vpop.f32.mrf.mxu0
      %v998 = vpop.f32.mrf.mxu0
      %v999 = vadd.f32 %v838, %v998
      %v1000 = vpop.f32.mrf.mxu0
      %1001 = vdwg.mxu0
      %v1002 = vadd.f32 %v456, %v876
      %v1003 = vadd.f32 %v457, %v879
      %v1004 = vadd.f32 %v458, %v884
      %v1005 = vadd.f32 %v459, %v887
      %v1006 = vadd.f32 %v460, %v892
      %v1007 = vadd.f32 %v461, %v895
      %v1008 = vadd.f32 %v462, %v900
      %v1009 = vadd.f32 %v463, %v903
      %v1010 = vadd.f32 %v464, %v908
      %v1011 = vadd.f32 %v465, %v911
      %v1012 = vadd.f32 %v466, %v916
      %v1013 = vadd.f32 %v467, %v919
      %v1014 = vadd.f32 %v468, %v924
      %v1015 = vadd.f32 %v469, %v927
      %v1016 = vadd.f32 %v470, %v932
      %v1017 = vadd.f32 %v471, %v935
      %v1018 = vadd.f32 %v472, %v940
      %v1019 = vadd.f32 %v473, %v943
      %v1020 = vadd.f32 %v474, %v948
      %v1021 = vadd.f32 %v475, %v951
      %v1022 = vadd.f32 %v476, %v956
      %v1023 = vadd.f32 %v477, %v959
      %v1024 = vadd.f32 %v478, %v964
      %v1025 = vadd.f32 %v479, %v967
      %v1026 = vadd.f32 %v480, %v972
      %v1027 = vadd.f32 %v481, %v975
      %v1028 = vadd.f32 %v482, %v980
      %v1029 = vadd.f32 %v483, %v983
      %v1030 = vadd.f32 %v484, %v988
      %v1031 = vadd.f32 %v485, %v991
      %v1032 = vadd.f32 %v486, %v996
      %v1033 = vadd.f32 %v487, %v999
      %1034 = vst [vmem:[#allocation2] sm:$0xff] %v1002
      %1035 = vst [vmem:[#allocation2 + $0x8] sm:$0xff] %v1003
      %1036 = vst [vmem:[#allocation2 + $0x10] sm:$0xff] %v1004
      %1037 = vst [vmem:[#allocation2 + $0x18] sm:$0xff] %v1005
      %1038 = vst [vmem:[#allocation2 + $0x20] sm:$0xff] %v1006
      %1039 = vst [vmem:[#allocation2 + $0x28] sm:$0xff] %v1007
      %1040 = vst [vmem:[#allocation2 + $0x30] sm:$0xff] %v1008
      %1041 = vst [vmem:[#allocation2 + $0x38] sm:$0xff] %v1009
      %1042 = vst [vmem:[#allocation2 + $0x40] sm:$0xff] %v1010
      %1043 = vst [vmem:[#allocation2 + $0x48] sm:$0xff] %v1011
      %1044 = vst [vmem:[#allocation2 + $0x50] sm:$0xff] %v1012
      %1045 = vst [vmem:[#allocation2 + $0x58] sm:$0xff] %v1013
      %1046 = vst [vmem:[#allocation2 + $0x60] sm:$0xff] %v1014
      %1047 = vst [vmem:[#allocation2 + $0x68] sm:$0xff] %v1015
      %1048 = vst [vmem:[#allocation2 + $0x70] sm:$0xff] %v1016
      %1049 = vst [vmem:[#allocation2 + $0x78] sm:$0xff] %v1017
      %1050 = vst [vmem:[#allocation2 + $0x80] sm:$0xff] %v1018
      %1051 = vst [vmem:[#allocation2 + $0x88] sm:$0xff] %v1019
      %1052 = vst [vmem:[#allocation2 + $0x90] sm:$0xff] %v1020
      %1053 = vst [vmem:[#allocation2 + $0x98] sm:$0xff] %v1021
      %1054 = vst [vmem:[#allocation2 + $0xa0] sm:$0xff] %v1022
      %1055 = vst [vmem:[#allocation2 + $0xa8] sm:$0xff] %v1023
      %1056 = vst [vmem:[#allocation2 + $0xb0] sm:$0xff] %v1024
      %1057 = vst [vmem:[#allocation2 + $0xb8] sm:$0xff] %v1025
      %1058 = vst [vmem:[#allocation2 + $0xc0] sm:$0xff] %v1026
      %1059 = vst [vmem:[#allocation2 + $0xc8] sm:$0xff] %v1027
      %1060 = vst [vmem:[#allocation2 + $0xd0] sm:$0xff] %v1028
      %1061 = vst [vmem:[#allocation2 + $0xd8] sm:$0xff] %v1029
      %1062 = vst [vmem:[#allocation2 + $0xe0] sm:$0xff] %v1030
      %1063 = vst [vmem:[#allocation2 + $0xe8] sm:$0xff] %v1031
      %1064 = vst [vmem:[#allocation2 + $0xf0] sm:$0xff] %v1032
      %1065 = vst [vmem:[#allocation2 + $0xf8] sm:$0xff] %v1033
      // Predicated region
      $region41: #{cross_block_gnn_forward.3} parent=35 // pred_check
        %p1066 = pneg %p255
      $region42: #{cross_block_gnn_forward.3} parent=35 // pred_check_branch
        %1068 = sbr.rel (%p1066) target = $region44
      $region43: #{cross_block_gnn_forward.3} parent=35 // pred_region
        %v1069 = vld [vmem:[#allocation2] sm:$0xff]
        %v1070 = vld [vmem:[#allocation2 + $0x8] sm:$0xff]
        %v1071 = vld [vmem:[#allocation2 + $0x10] sm:$0xff]
        %v1072 = vld [vmem:[#allocation2 + $0x18] sm:$0xff]
        %v1073 = vld [vmem:[#allocation2 + $0x20] sm:$0xff]
        %v1074 = vld [vmem:[#allocation2 + $0x28] sm:$0xff]
        %v1075 = vld [vmem:[#allocation2 + $0x30] sm:$0xff]
        %v1076 = vld [vmem:[#allocation2 + $0x38] sm:$0xff]
        %v1077 = vld [vmem:[#allocation2 + $0x40] sm:$0xff]
        %v1078 = vld [vmem:[#allocation2 + $0x48] sm:$0xff]
        %v1079 = vld [vmem:[#allocation2 + $0x50] sm:$0xff]
        %v1080 = vld [vmem:[#allocation2 + $0x58] sm:$0xff]
        %v1081 = vld [vmem:[#allocation2 + $0x60] sm:$0xff]
        %v1082 = vld [vmem:[#allocation2 + $0x68] sm:$0xff]
        %v1083 = vld [vmem:[#allocation2 + $0x70] sm:$0xff]
        %v1084 = vld [vmem:[#allocation2 + $0x78] sm:$0xff]
        %v1085 = vld [vmem:[#allocation2 + $0x80] sm:$0xff]
        %v1086 = vld [vmem:[#allocation2 + $0x88] sm:$0xff]
        %v1087 = vld [vmem:[#allocation2 + $0x90] sm:$0xff]
        %v1088 = vld [vmem:[#allocation2 + $0x98] sm:$0xff]
        %v1089 = vld [vmem:[#allocation2 + $0xa0] sm:$0xff]
        %v1090 = vld [vmem:[#allocation2 + $0xa8] sm:$0xff]
        %v1091 = vld [vmem:[#allocation2 + $0xb0] sm:$0xff]
        %v1092 = vld [vmem:[#allocation2 + $0xb8] sm:$0xff]
        %v1093 = vld [vmem:[#allocation2 + $0xc0] sm:$0xff]
        %v1094 = vld [vmem:[#allocation2 + $0xc8] sm:$0xff]
        %v1095 = vld [vmem:[#allocation2 + $0xd0] sm:$0xff]
        %v1096 = vld [vmem:[#allocation2 + $0xd8] sm:$0xff]
        %v1097 = vld [vmem:[#allocation2 + $0xe0] sm:$0xff]
        %v1098 = vld [vmem:[#allocation2 + $0xe8] sm:$0xff]
        %v1099 = vld [vmem:[#allocation2 + $0xf0] sm:$0xff]
        %v1100 = vld [vmem:[#allocation2 + $0xf8] sm:$0xff]
        %v1101 = vld [vmem:[%s246] sm:$0xff]
        %v1102 = vld [vmem:[%s246 + $0x8] sm:$0xff]
        %v1103 = vld [vmem:[%s246 + $0x10] sm:$0xff]
        %v1104 = vld [vmem:[%s246 + $0x18] sm:$0xff]
        %v1105 = vld [vmem:[%s246 + $0x20] sm:$0xff]
        %v1106 = vld [vmem:[%s246 + $0x28] sm:$0xff]
        %v1107 = vld [vmem:[%s246 + $0x30] sm:$0xff]
        %v1108 = vld [vmem:[%s246 + $0x38] sm:$0xff]
        %v1109 = vld [vmem:[%s246 + $0x40] sm:$0xff]
        %v1110 = vld [vmem:[%s246 + $0x48] sm:$0xff]
        %v1111 = vld [vmem:[%s246 + $0x50] sm:$0xff]
        %v1112 = vld [vmem:[%s246 + $0x58] sm:$0xff]
        %v1113 = vld [vmem:[%s246 + $0x60] sm:$0xff]
        %v1114 = vld [vmem:[%s246 + $0x68] sm:$0xff]
        %v1115 = vld [vmem:[%s246 + $0x70] sm:$0xff]
        %v1116 = vld [vmem:[%s246 + $0x78] sm:$0xff]
        %v1117 = vld [vmem:[%s246 + $0x80] sm:$0xff]
        %v1118 = vld [vmem:[%s246 + $0x88] sm:$0xff]
        %v1119 = vld [vmem:[%s246 + $0x90] sm:$0xff]
        %v1120 = vld [vmem:[%s246 + $0x98] sm:$0xff]
        %v1121 = vld [vmem:[%s246 + $0xa0] sm:$0xff]
        %v1122 = vld [vmem:[%s246 + $0xa8] sm:$0xff]
        %v1123 = vld [vmem:[%s246 + $0xb0] sm:$0xff]
        %v1124 = vld [vmem:[%s246 + $0xb8] sm:$0xff]
        %v1125 = vld [vmem:[%s246 + $0xc0] sm:$0xff]
        %v1126 = vld [vmem:[%s246 + $0xc8] sm:$0xff]
        %v1127 = vld [vmem:[%s246 + $0xd0] sm:$0xff]
        %v1128 = vld [vmem:[%s246 + $0xd8] sm:$0xff]
        %v1129 = vld [vmem:[%s246 + $0xe0] sm:$0xff]
        %v1130 = vld [vmem:[%s246 + $0xe8] sm:$0xff]
        %v1131 = vld [vmem:[%s246 + $0xf0] sm:$0xff]
        %v1132 = vld [vmem:[%s246 + $0xf8] sm:$0xff]
        %1134 = vset.pattern.permute.xlu0 0
        %1135 = vperm.xlu0 %1134, %v1101
        %v1136 = vpop.permute.xlu0 %1135
        %1139 = vset.pattern.permute.xlu0 0
        %1140 = vperm.xlu0 %1139, %v1102
        %v1141 = vpop.permute.xlu0 %1140
        %1144 = vset.pattern.permute.xlu0 0
        %1145 = vperm.xlu0 %1144, %v1103
        %v1146 = vpop.permute.xlu0 %1145
        %1149 = vset.pattern.permute.xlu0 0
        %1150 = vperm.xlu0 %1149, %v1104
        %v1151 = vpop.permute.xlu0 %1150
        %1154 = vset.pattern.permute.xlu0 0
        %1155 = vperm.xlu0 %1154, %v1105
        %v1156 = vpop.permute.xlu0 %1155
        %1159 = vset.pattern.permute.xlu0 0
        %1160 = vperm.xlu0 %1159, %v1106
        %v1161 = vpop.permute.xlu0 %1160
        %1164 = vset.pattern.permute.xlu0 0
        %1165 = vperm.xlu0 %1164, %v1107
        %v1166 = vpop.permute.xlu0 %1165
        %1169 = vset.pattern.permute.xlu0 0
        %1170 = vperm.xlu0 %1169, %v1108
        %v1171 = vpop.permute.xlu0 %1170
        %1174 = vset.pattern.permute.xlu0 0
        %1175 = vperm.xlu0 %1174, %v1109
        %v1176 = vpop.permute.xlu0 %1175
        %1179 = vset.pattern.permute.xlu0 0
        %1180 = vperm.xlu0 %1179, %v1110
        %v1181 = vpop.permute.xlu0 %1180
        %1184 = vset.pattern.permute.xlu0 0
        %1185 = vperm.xlu0 %1184, %v1111
        %v1186 = vpop.permute.xlu0 %1185
        %1189 = vset.pattern.permute.xlu0 0
        %1190 = vperm.xlu0 %1189, %v1112
        %v1191 = vpop.permute.xlu0 %1190
        %1194 = vset.pattern.permute.xlu0 0
        %1195 = vperm.xlu0 %1194, %v1113
        %v1196 = vpop.permute.xlu0 %1195
        %1199 = vset.pattern.permute.xlu0 0
        %1200 = vperm.xlu0 %1199, %v1114
        %v1201 = vpop.permute.xlu0 %1200
        %1204 = vset.pattern.permute.xlu0 0
        %1205 = vperm.xlu0 %1204, %v1115
        %v1206 = vpop.permute.xlu0 %1205
        %1209 = vset.pattern.permute.xlu0 0
        %1210 = vperm.xlu0 %1209, %v1116
        %v1211 = vpop.permute.xlu0 %1210
        %1214 = vset.pattern.permute.xlu0 0
        %1215 = vperm.xlu0 %1214, %v1117
        %v1216 = vpop.permute.xlu0 %1215
        %1219 = vset.pattern.permute.xlu0 0
        %1220 = vperm.xlu0 %1219, %v1118
        %v1221 = vpop.permute.xlu0 %1220
        %1224 = vset.pattern.permute.xlu0 0
        %1225 = vperm.xlu0 %1224, %v1119
        %v1226 = vpop.permute.xlu0 %1225
        %1229 = vset.pattern.permute.xlu0 0
        %1230 = vperm.xlu0 %1229, %v1120
        %v1231 = vpop.permute.xlu0 %1230
        %1234 = vset.pattern.permute.xlu0 0
        %1235 = vperm.xlu0 %1234, %v1121
        %v1236 = vpop.permute.xlu0 %1235
        %1239 = vset.pattern.permute.xlu0 0
        %1240 = vperm.xlu0 %1239, %v1122
        %v1241 = vpop.permute.xlu0 %1240
        %1244 = vset.pattern.permute.xlu0 0
        %1245 = vperm.xlu0 %1244, %v1123
        %v1246 = vpop.permute.xlu0 %1245
        %1249 = vset.pattern.permute.xlu0 0
        %1250 = vperm.xlu0 %1249, %v1124
        %v1251 = vpop.permute.xlu0 %1250
        %1254 = vset.pattern.permute.xlu0 0
        %1255 = vperm.xlu0 %1254, %v1125
        %v1256 = vpop.permute.xlu0 %1255
        %1259 = vset.pattern.permute.xlu0 0
        %1260 = vperm.xlu0 %1259, %v1126
        %v1261 = vpop.permute.xlu0 %1260
        %1264 = vset.pattern.permute.xlu0 0
        %1265 = vperm.xlu0 %1264, %v1127
        %v1266 = vpop.permute.xlu0 %1265
        %1269 = vset.pattern.permute.xlu0 0
        %1270 = vperm.xlu0 %1269, %v1128
        %v1271 = vpop.permute.xlu0 %1270
        %1274 = vset.pattern.permute.xlu0 0
        %1275 = vperm.xlu0 %1274, %v1129
        %v1276 = vpop.permute.xlu0 %1275
        %1279 = vset.pattern.permute.xlu0 0
        %1280 = vperm.xlu0 %1279, %v1130
        %v1281 = vpop.permute.xlu0 %1280
        %1284 = vset.pattern.permute.xlu0 0
        %1285 = vperm.xlu0 %1284, %v1131
        %v1286 = vpop.permute.xlu0 %1285
        %1289 = vset.pattern.permute.xlu0 0
        %1290 = vperm.xlu0 %1289, %v1132
        %v1291 = vpop.permute.xlu0 %1290
        %v1293 = vmul.f32 %v1069, %v1136
        %v1294 = vmul.f32 %v1070, %v1141
        %v1295 = vmul.f32 %v1071, %v1146
        %v1296 = vmul.f32 %v1072, %v1151
        %v1297 = vmul.f32 %v1073, %v1156
        %v1298 = vmul.f32 %v1074, %v1161
        %v1299 = vmul.f32 %v1075, %v1166
        %v1300 = vmul.f32 %v1076, %v1171
        %v1301 = vmul.f32 %v1077, %v1176
        %v1302 = vmul.f32 %v1078, %v1181
        %v1303 = vmul.f32 %v1079, %v1186
        %v1304 = vmul.f32 %v1080, %v1191
        %v1305 = vmul.f32 %v1081, %v1196
        %v1306 = vmul.f32 %v1082, %v1201
        %v1307 = vmul.f32 %v1083, %v1206
        %v1308 = vmul.f32 %v1084, %v1211
        %v1309 = vmul.f32 %v1085, %v1216
        %v1310 = vmul.f32 %v1086, %v1221
        %v1311 = vmul.f32 %v1087, %v1226
        %v1312 = vmul.f32 %v1088, %v1231
        %v1313 = vmul.f32 %v1089, %v1236
        %v1314 = vmul.f32 %v1090, %v1241
        %v1315 = vmul.f32 %v1091, %v1246
        %v1316 = vmul.f32 %v1092, %v1251
        %v1317 = vmul.f32 %v1093, %v1256
        %v1318 = vmul.f32 %v1094, %v1261
        %v1319 = vmul.f32 %v1095, %v1266
        %v1320 = vmul.f32 %v1096, %v1271
        %v1321 = vmul.f32 %v1097, %v1276
        %v1322 = vmul.f32 %v1098, %v1281
        %v1323 = vmul.f32 %v1099, %v1286
        %v1324 = vmul.f32 %v1100, %v1291
        %v1325 = vld [vmem:[%s3] sm:$0x1]
        %v1327 = vlaneseq
        %v1328 = vshrl.u32 %v1327, 7
        %v1329 = vsub.s32 0, %v1328
        %v1330 = vrot.slane %v1325, %v1329
        %v1332 = vadd.f32 %v1293, %v1330
        %v1333 = vadd.f32 %v1294, %v1330
        %v1334 = vadd.f32 %v1295, %v1330
        %v1335 = vadd.f32 %v1296, %v1330
        %v1336 = vadd.f32 %v1297, %v1330
        %v1337 = vadd.f32 %v1298, %v1330
        %v1338 = vadd.f32 %v1299, %v1330
        %v1339 = vadd.f32 %v1300, %v1330
        %v1340 = vadd.f32 %v1301, %v1330
        %v1341 = vadd.f32 %v1302, %v1330
        %v1342 = vadd.f32 %v1303, %v1330
        %v1343 = vadd.f32 %v1304, %v1330
        %v1344 = vadd.f32 %v1305, %v1330
        %v1345 = vadd.f32 %v1306, %v1330
        %v1346 = vadd.f32 %v1307, %v1330
        %v1347 = vadd.f32 %v1308, %v1330
        %v1348 = vadd.f32 %v1309, %v1330
        %v1349 = vadd.f32 %v1310, %v1330
        %v1350 = vadd.f32 %v1311, %v1330
        %v1351 = vadd.f32 %v1312, %v1330
        %v1352 = vadd.f32 %v1313, %v1330
        %v1353 = vadd.f32 %v1314, %v1330
        %v1354 = vadd.f32 %v1315, %v1330
        %v1355 = vadd.f32 %v1316, %v1330
        %v1356 = vadd.f32 %v1317, %v1330
        %v1357 = vadd.f32 %v1318, %v1330
        %v1358 = vadd.f32 %v1319, %v1330
        %v1359 = vadd.f32 %v1320, %v1330
        %v1360 = vadd.f32 %v1321, %v1330
        %v1361 = vadd.f32 %v1322, %v1330
        %v1362 = vadd.f32 %v1323, %v1330
        %v1363 = vadd.f32 %v1324, %v1330
        %v1364 = vmax.f32 %v1332, 0.0
        %v1365 = vmax.f32 %v1333, 0.0
        %v1366 = vmax.f32 %v1334, 0.0
        %v1367 = vmax.f32 %v1335, 0.0
        %v1368 = vmax.f32 %v1336, 0.0
        %v1369 = vmax.f32 %v1337, 0.0
        %v1370 = vmax.f32 %v1338, 0.0
        %v1371 = vmax.f32 %v1339, 0.0
        %v1372 = vmax.f32 %v1340, 0.0
        %v1373 = vmax.f32 %v1341, 0.0
        %v1374 = vmax.f32 %v1342, 0.0
        %v1375 = vmax.f32 %v1343, 0.0
        %v1376 = vmax.f32 %v1344, 0.0
        %v1377 = vmax.f32 %v1345, 0.0
        %v1378 = vmax.f32 %v1346, 0.0
        %v1379 = vmax.f32 %v1347, 0.0
        %v1380 = vmax.f32 %v1348, 0.0
        %v1381 = vmax.f32 %v1349, 0.0
        %v1382 = vmax.f32 %v1350, 0.0
        %v1383 = vmax.f32 %v1351, 0.0
        %v1384 = vmax.f32 %v1352, 0.0
        %v1385 = vmax.f32 %v1353, 0.0
        %v1386 = vmax.f32 %v1354, 0.0
        %v1387 = vmax.f32 %v1355, 0.0
        %v1388 = vmax.f32 %v1356, 0.0
        %v1389 = vmax.f32 %v1357, 0.0
        %v1390 = vmax.f32 %v1358, 0.0
        %v1391 = vmax.f32 %v1359, 0.0
        %v1392 = vmax.f32 %v1360, 0.0
        %v1393 = vmax.f32 %v1361, 0.0
        %v1394 = vmax.f32 %v1362, 0.0
        %v1395 = vmax.f32 %v1363, 0.0
        %1396 = vst [vmem:[%s252] sm:$0xff] %v1364
        %1397 = vst [vmem:[%s252 + $0x8] sm:$0xff] %v1365
        %1398 = vst [vmem:[%s252 + $0x10] sm:$0xff] %v1366
        %1399 = vst [vmem:[%s252 + $0x18] sm:$0xff] %v1367
        %1400 = vst [vmem:[%s252 + $0x20] sm:$0xff] %v1368
        %1401 = vst [vmem:[%s252 + $0x28] sm:$0xff] %v1369
        %1402 = vst [vmem:[%s252 + $0x30] sm:$0xff] %v1370
        %1403 = vst [vmem:[%s252 + $0x38] sm:$0xff] %v1371
        %1404 = vst [vmem:[%s252 + $0x40] sm:$0xff] %v1372
        %1405 = vst [vmem:[%s252 + $0x48] sm:$0xff] %v1373
        %1406 = vst [vmem:[%s252 + $0x50] sm:$0xff] %v1374
        %1407 = vst [vmem:[%s252 + $0x58] sm:$0xff] %v1375
        %1408 = vst [vmem:[%s252 + $0x60] sm:$0xff] %v1376
        %1409 = vst [vmem:[%s252 + $0x68] sm:$0xff] %v1377
        %1410 = vst [vmem:[%s252 + $0x70] sm:$0xff] %v1378
        %1411 = vst [vmem:[%s252 + $0x78] sm:$0xff] %v1379
        %1412 = vst [vmem:[%s252 + $0x80] sm:$0xff] %v1380
        %1413 = vst [vmem:[%s252 + $0x88] sm:$0xff] %v1381
        %1414 = vst [vmem:[%s252 + $0x90] sm:$0xff] %v1382
        %1415 = vst [vmem:[%s252 + $0x98] sm:$0xff] %v1383
        %1416 = vst [vmem:[%s252 + $0xa0] sm:$0xff] %v1384
        %1417 = vst [vmem:[%s252 + $0xa8] sm:$0xff] %v1385
        %1418 = vst [vmem:[%s252 + $0xb0] sm:$0xff] %v1386
        %1419 = vst [vmem:[%s252 + $0xb8] sm:$0xff] %v1387
        %1420 = vst [vmem:[%s252 + $0xc0] sm:$0xff] %v1388
        %1421 = vst [vmem:[%s252 + $0xc8] sm:$0xff] %v1389
        %1422 = vst [vmem:[%s252 + $0xd0] sm:$0xff] %v1390
        %1423 = vst [vmem:[%s252 + $0xd8] sm:$0xff] %v1391
        %1424 = vst [vmem:[%s252 + $0xe0] sm:$0xff] %v1392
        %1425 = vst [vmem:[%s252 + $0xe8] sm:$0xff] %v1393
        %1426 = vst [vmem:[%s252 + $0xf0] sm:$0xff] %v1394
        %1427 = vst [vmem:[%s252 + $0xf8] sm:$0xff] %v1395
      $region44: #{cross_block_gnn_forward.3} parent=35 // pred_fallthru
        _
      %s1428 = smul.u32 32, %s19
      %p1429 = scmp.lt.s32.totalorder %s1428, 63
      %s1430 = scalar_select %p1429, %s1428, 63
      %s1431 = smul.addr %s1430, 8
      %s1432 = scalar_lea.vmem %s4, %s1431
      // Predicated region
      $region45: #{cross_block_gnn_forward.3} parent=35 // pred_check
        %p1433 = pneg %p141
      $region46: #{cross_block_gnn_forward.3} parent=35 // pred_check_branch
        %1435 = sbr.rel (%p1433) target = $region48
      $region47: #{cross_block_gnn_forward.3} parent=35 // pred_region
        %s1436 = smul.u32 32, %s19
      $region48: #{cross_block_gnn_forward.3} parent=35 // pred_fallthru
        _
    $region36: #{cross_block_gnn_forward.3} parent=5 // pred_fallthru
      _
    %p1437 = scmp.le.s32.totalorder 2, %s10
    // Predicated region
    $region49: #{cross_block_gnn_forward.3} parent=5 // pred_check
      %p1438 = pneg %p1437
    $region50: #{cross_block_gnn_forward.3} parent=5 // pred_check_branch
      %1440 = sbr.rel (%p1438) target = $region52
    $region51: #{cross_block_gnn_forward.3} parent=5 // pred_region
      %s1441 = ssub.s32 %s10, 2
      // Predicated region
      $region53: #{cross_block_gnn_forward.3} parent=51 // pred_check
        %p1442 = pneg %p147
      $region54: #{cross_block_gnn_forward.3} parent=51 // pred_check_branch
        %1444 = sbr.rel (%p1442) target = $region56
      $region55: #{cross_block_gnn_forward.3} parent=51 // pred_region
        %s1445 = smul.u32 32, %s21
        %p1446 = scmp.lt.s32.totalorder %s1445, 63
        %s1447 = scalar_select %p1446, %s1445, 63
        %s1448 = smul.addr %s1447, 8
        %s1449 = scalar_lea.vmem %s4, %s1448
      $region56: #{cross_block_gnn_forward.3} parent=51 // pred_fallthru
        _
    $region52: #{cross_block_gnn_forward.3} parent=5 // pred_fallthru
      _
  $region6: #{cross_block_gnn_forward.3} parent=0 // loop_footer
    %s14 = sadd.s32 1, %s10
  $region7: #{cross_block_gnn_forward.3} parent=0 // loop_footer_branch
    %9 = sbr.rel target = $region3
  $region8: #{cross_block_gnn_forward.3} parent=0 // loop_exit
    _

</llo_original>
